<compile_context>
chip_gen: v7x
topology: tpu7x:2x2x1
jax: 0.10.0
libtpu: 0.0.40
codegen_flags: <defaults>
</compile_context>

<pallas_src>
import functools

import jax
import jax.numpy as jnp
from jax.experimental import pallas as pl
from jax.experimental.pallas import tpu as pltpu


# ---------------------------------------------------------------------------
# Pallas kernel: per-mode complex channel mixing as two real batched matmuls.
# ---------------------------------------------------------------------------
def _spectral_matmul_kernel(ar_ref, ai_ref, w_ref, o_ref, *, co, precision):
    """ar/ai: (Tm, Tb, Ci)   w: (Tm, Ci, 2*Co) = [wr | wi]   o: (Tm, Tb, 2*Co)."""
    dims = (((2,), (1,)), ((0,), (0,)))  # contract Ci, batch over the mode axis
    rw = jax.lax.dot_general(ar_ref[...], w_ref[...], dims,
                             preferred_element_type=jnp.float32,
                             precision=precision)          # [ar@wr | ar@wi]
    iw = jax.lax.dot_general(ai_ref[...], w_ref[...], dims,
                             preferred_element_type=jnp.float32,
                             precision=precision)          # [ai@wr | ai@wi]
    out_r = rw[:, :, :co] - iw[:, :, co:]                  # ar@wr - ai@wi
    out_i = rw[:, :, co:] + iw[:, :, :co]                  # ar@wi + ai@wr
    o_ref[...] = jnp.concatenate([out_r, out_i], axis=-1).astype(o_ref.dtype)


def _vmem_capacity_bytes(default=64 * 1024 * 1024):
    """Per-core VMEM capacity; fall back to v7x's 64 MiB (the strictest)."""
    try:
        info = pltpu.get_tpu_info()
        for name in ("vmem_capacity_bytes", "vmem_bytes", "vmem_size_bytes"):
            val = getattr(info, name, None)
            if val:
                return int(val)
    except Exception:
        pass
    return default


def _choose_tiles(m_total, batch, ci, co, act_dtype, w_dtype):
    """Pick (tile_m, tile_b, vmem_limit_bytes) from the full block footprint."""
    # Batch tile: MXU M-dimension chunk; bounds lhs/out VMEM independently of B.
    if batch > 256:
        tile_b = max(d for d in range(1, 257) if batch % d == 0)
    else:
        tile_b = batch

    capacity = _vmem_capacity_bytes()
    vmem_limit = int(min(int(capacity * 0.8), 100 * 1024 * 1024))
    budget = int(vmem_limit * 0.6)          # double-buffered block footprint cap

    bpa = jnp.dtype(act_dtype).itemsize
    bpw = jnp.dtype(w_dtype).itemsize
    per_mode = 2 * (                        # x2: everything is double-buffered
        ci * (2 * co) * bpw                 # weight slab [wr | wi]
        + 2 * tile_b * ci * bpa             # ar + ai activation blocks
        + tile_b * (2 * co) * 4             # f32 output block
    )
    max_tile = max(1, budget // per_mode)

    divisors = [d for d in range(1, m_total + 1)
                if m_total % d == 0 and d <= max_tile]
    if not divisors:
        divisors = [1]
    # Prefer an even number of grid steps so v7x megacore splits the parallel
    # mode axis evenly across its two TensorCores.
    even_steps = [d for d in divisors if (m_total // d) % 2 == 0]
    tile_m = max(even_steps) if even_steps else max(divisors)
    return tile_m, tile_b, vmem_limit


def _spectral_mul_pallas(ar, ai, w_packed, *, tile_m, tile_b, co,
                         precision, vmem_limit_bytes):
    """ar/ai: (M, B, Ci), w_packed: (M, Ci, 2*Co) -> (M, B, 2*Co) f32."""
    m_total, batch, ci = ar.shape
    n = w_packed.shape[-1]                  # 2*Co
    grid = (m_total // tile_m, batch // tile_b)

    flops = 2 * 2 * m_total * batch * ci * n        # two batched dot_generals
    bytes_accessed = (2 * ar.size * ar.dtype.itemsize
                      + w_packed.size * w_packed.dtype.itemsize
                      + m_total * batch * n * 4)

    kernel = functools.partial(_spectral_matmul_kernel, co=co, precision=precision)
    return pl.pallas_call(
        kernel,
        out_shape=jax.ShapeDtypeStruct((m_total, batch, n), jnp.float32),
        grid_spec=pltpu.PrefetchScalarGridSpec(
            num_scalar_prefetch=0,
            grid=grid,
            in_specs=[
                pl.BlockSpec((tile_m, tile_b, ci), lambda i, j: (i, j, 0)),
                pl.BlockSpec((tile_m, tile_b, ci), lambda i, j: (i, j, 0)),
                # Weight block ignores the (inner, fastest) batch axis -> it
                # stays resident in VMEM while the batch loop runs.
                pl.BlockSpec((tile_m, ci, n), lambda i, j: (i, 0, 0)),
            ],
            out_specs=pl.BlockSpec((tile_m, tile_b, n), lambda i, j: (i, j, 0)),
        ),
        compiler_params=pltpu.CompilerParams(
            # Mode and batch tiles are independent -> shard across v7x's 2 TCs.
            dimension_semantics=("parallel", "parallel"),
            vmem_limit_bytes=vmem_limit_bytes,
        ),
        cost_estimate=pl.CostEstimate(flops=flops, transcendentals=0,
                                      bytes_accessed=bytes_accessed),
    )(ar, ai, w_packed)


class SpectralConv2dFast:
    """JAX/Pallas port of the PyTorch SpectralConv2d_fast module."""

    def __init__(self, in_channels, out_channels, modes1, modes2, key,
                 use_bf16=True, highest_precision=False):
        self.in_channels = in_channels
        self.out_channels = out_channels
        self.modes1 = modes1
        self.modes2 = modes2
        scale = 1.0 / (in_channels * out_channels)
        k1, k2, k3, k4 = jax.random.split(key, 4)
        shape = (in_channels, out_channels, modes1, modes2)
        # deterministic synthetic init matching scale * torch.rand(..., cfloat)
        self.weights1 = scale * (
            jax.random.uniform(k1, shape, jnp.float32)
            + 1j * jax.random.uniform(k2, shape, jnp.float32)
        ).astype(jnp.complex64)
        self.weights2 = scale * (
            jax.random.uniform(k3, shape, jnp.float32)
            + 1j * jax.random.uniform(k4, shape, jnp.float32)
        ).astype(jnp.complex64)

        # Production default: bf16 operands, f32 accumulation (single MXU pass).
        # HIGHEST precision on f32 operands (multi-pass bf16 emulation) is only
        # for the tight-tolerance correctness check.
        self.compute_dtype = jnp.bfloat16 if use_bf16 else jnp.float32
        self.precision = (jax.lax.Precision.HIGHEST
                          if (highest_precision and not use_bf16)
                          else jax.lax.Precision.DEFAULT)

        # ---- pre-pack weights once: (M, Ci, 2*Co) = [wr | wi] ----
        m1, m2, ci, co = modes1, modes2, in_channels, out_channels
        w = jnp.concatenate(
            [jnp.transpose(self.weights1, (2, 3, 0, 1)).reshape(m1 * m2, ci, co),
             jnp.transpose(self.weights2, (2, 3, 0, 1)).reshape(m1 * m2, ci, co)],
            axis=0)                                             # (M, Ci, Co) complex
        self.w_packed = jnp.concatenate(
            [jnp.real(w), jnp.imag(w)], axis=-1).astype(self.compute_dtype)
        self._num_modes = 2 * m1 * m2

    def __call__(self, x):
        # x: (B, C_in, H, W) float32
        batch, ci, height, width = x.shape
        m1, m2 = self.modes1, self.modes2
        co = self.out_channels
        wf = width // 2 + 1
        m_total = self._num_modes

        # TODO(synk): rfft2/irfft2 have no Pallas primitive; they stay in plain JAX.
        x_ft = jnp.fft.rfft2(x)                                 # (B, Ci, H, Wf) c64

        # Fuse both retained-mode corners along one flattened mode axis.
        top = x_ft[:, :, :m1, :m2].reshape(batch, ci, m1 * m2)
        bot = x_ft[:, :, -m1:, :m2].reshape(batch, ci, m1 * m2)
        a = jnp.transpose(jnp.concatenate([top, bot], axis=-1), (2, 0, 1))  # (M,B,Ci)
        ar = jnp.real(a).astype(self.compute_dtype)
        ai = jnp.imag(a).astype(self.compute_dtype)

        tile_m, tile_b, vmem_limit = _choose_tiles(
            m_total, batch, ci, co, self.compute_dtype, self.w_packed.dtype)

        out = _spectral_mul_pallas(
            ar, ai, self.w_packed, tile_m=tile_m, tile_b=tile_b, co=co,
            precision=self.precision,
            vmem_limit_bytes=vmem_limit)                        # (M, B, 2*Co) f32

        out_c = jax.lax.complex(out[:, :, :co], out[:, :, co:])  # (M, B, Co) c64
        out_c = jnp.transpose(out_c, (1, 2, 0))                  # (B, Co, M)

        out_ft = jnp.zeros((batch, co, height, wf), dtype=jnp.complex64)
        # NOTE: if H < 2*modes1 the two corner slices overlap and the bottom
        # write wins, mirroring the PyTorch module's behavior.
        out_ft = out_ft.at[:, :, :m1, :m2].set(
            out_c[:, :, :m1 * m2].reshape(batch, co, m1, m2))
        out_ft = out_ft.at[:, :, -m1:, :m2].set(
            out_c[:, :, m1 * m2:].reshape(batch, co, m1, m2))

        return jnp.fft.irfft2(out_ft, s=(height, width))


def _reference_forward(layer, x):
    """Pure-JAX reference (complex einsum) for a correctness check."""
    batch, _, height, width = x.shape
    m1, m2 = layer.modes1, layer.modes2
    wf = width // 2 + 1
    hp = jax.lax.Precision.HIGHEST
    x_ft = jnp.fft.rfft2(x)
    top = jnp.einsum('bixy,ioxy->boxy', x_ft[:, :, :m1, :m2], layer.weights1,
                     precision=hp)
    bot = jnp.einsum('bixy,ioxy->boxy', x_ft[:, :, -m1:, :m2], layer.weights2,
                     precision=hp)
    out_ft = jnp.zeros((batch, layer.out_channels, height, wf), dtype=jnp.complex64)
    out_ft = out_ft.at[:, :, :m1, :m2].set(top)
    out_ft = out_ft.at[:, :, -m1:, :m2].set(bot)
    return jnp.fft.irfft2(out_ft, s=(height, width))


if __name__ == "__main__":
    key = jax.random.PRNGKey(0)
    k_param, k_x = jax.random.split(key)

    B, C_in, C_out, H, W = 2, 4, 4, 16, 16
    modes1, modes2 = 4, 4

    x = jax.random.normal(k_x, (B, C_in, H, W), dtype=jnp.float32)

    # Production config: bf16 operands + f32 accumulation.
    layer = SpectralConv2dFast(C_in, C_out, modes1, modes2, k_param)
    out = jax.block_until_ready(layer(x))

    # Correctness config: f32 operands + HIGHEST precision (same weights, same key).
    layer_hp = SpectralConv2dFast(C_in, C_out, modes1, modes2, k_param,
                                  use_bf16=False, highest_precision=True)
    out_hp = jax.block_until_ready(layer_hp(x))

    ref = jax.block_until_ready(_reference_forward(layer_hp, x))
    assert out.shape == (B, C_out, H, W)
    assert jnp.allclose(out_hp, ref, atol=1e-3, rtol=1e-3)
    assert jnp.allclose(out, ref, atol=2e-2, rtol=2e-2)

    print("KERNEL_OK")
</pallas_src>

<mosaic_0001>
module attributes {stable_mosaic.version = 11 : i64} {
  func.func @_spectral_matmul_kernel(%arg0: i32, %arg1: i32, %arg2: memref<16x2x4xbf16, #tpu.memory_space<vmem>>, %arg3: memref<16x2x4xbf16, #tpu.memory_space<vmem>>, %arg4: memref<16x4x8xbf16, #tpu.memory_space<vmem>>, %arg5: memref<16x2x8xf32, #tpu.memory_space<vmem>>) attributes {dimension_semantics = [#tpu.dimension_semantics<parallel>, #tpu.dimension_semantics<parallel>], iteration_bounds = array<i64: 2, 1>, scalar_prefetch = 0 : i64, scratch_operands = 0 : i64, tpu.core_type = #tpu.core_type<tc>, window_params = [{transform_indices = @transform_0, window_bounds = array<i64: 16, 2, 4>}, {transform_indices = @transform_1, window_bounds = array<i64: 16, 2, 4>}, {transform_indices = @transform_2, window_bounds = array<i64: 16, 4, 8>}, {transform_indices = @transform_3, window_bounds = array<i64: 16, 2, 8>}]} {
    %c0 = arith.constant 0 : index
    %c0_0 = arith.constant 0 : index
    %c0_1 = arith.constant 0 : index
    %0 = vector.load %arg2[%c0, %c0_0, %c0_1] : memref<16x2x4xbf16, #tpu.memory_space<vmem>>, vector<16x2x4xbf16>
    %c0_2 = arith.constant 0 : index
    %c0_3 = arith.constant 0 : index
    %c0_4 = arith.constant 0 : index
    %1 = vector.load %arg4[%c0_2, %c0_3, %c0_4] : memref<16x4x8xbf16, #tpu.memory_space<vmem>>, vector<16x4x8xbf16>
    %cst = arith.constant dense<0.000000e+00> : vector<16x2x8xf32>
    %2 = tpu.matmul %0, %1, %cst {dimension_numbers = #tpu.dot_dimension_numbers<[2], [1], [1], [2], [0, 0, 0, 1, 1, 2], [0], [0]>} : vector<16x2x4xbf16>, vector<16x4x8xbf16>, vector<16x2x8xf32> -> vector<16x2x8xf32>
    %c0_5 = arith.constant 0 : index
    %c0_6 = arith.constant 0 : index
    %c0_7 = arith.constant 0 : index
    %3 = vector.load %arg3[%c0_5, %c0_6, %c0_7] : memref<16x2x4xbf16, #tpu.memory_space<vmem>>, vector<16x2x4xbf16>
    %c0_8 = arith.constant 0 : index
    %c0_9 = arith.constant 0 : index
    %c0_10 = arith.constant 0 : index
    %4 = vector.load %arg4[%c0_8, %c0_9, %c0_10] : memref<16x4x8xbf16, #tpu.memory_space<vmem>>, vector<16x4x8xbf16>
    %cst_11 = arith.constant dense<0.000000e+00> : vector<16x2x8xf32>
    %5 = tpu.matmul %3, %4, %cst_11 {dimension_numbers = #tpu.dot_dimension_numbers<[2], [1], [1], [2], [0, 0, 0, 1, 1, 2], [0], [0]>} : vector<16x2x4xbf16>, vector<16x4x8xbf16>, vector<16x2x8xf32> -> vector<16x2x8xf32>
    %6 = vector.extract_strided_slice %2 {offsets = [0, 0, 0], sizes = [16, 2, 4], strides = [1, 1, 1]} : vector<16x2x8xf32> to vector<16x2x4xf32>
    %7 = vector.extract_strided_slice %5 {offsets = [0, 0, 4], sizes = [16, 2, 4], strides = [1, 1, 1]} : vector<16x2x8xf32> to vector<16x2x4xf32>
    %8 = arith.subf %6, %7 : vector<16x2x4xf32>
    %9 = vector.extract_strided_slice %2 {offsets = [0, 0, 4], sizes = [16, 2, 4], strides = [1, 1, 1]} : vector<16x2x8xf32> to vector<16x2x4xf32>
    %10 = vector.extract_strided_slice %5 {offsets = [0, 0, 0], sizes = [16, 2, 4], strides = [1, 1, 1]} : vector<16x2x8xf32> to vector<16x2x4xf32>
    %11 = arith.addf %9, %10 : vector<16x2x4xf32>
    %12 = tpu.concatenate %8, %11 in 2 : vector<16x2x4xf32>, vector<16x2x4xf32> -> vector<16x2x8xf32>
    %c0_12 = arith.constant 0 : index
    %c0_13 = arith.constant 0 : index
    %c0_14 = arith.constant 0 : index
    %13 = vector.load %arg5[%c0_12, %c0_13, %c0_14] : memref<16x2x8xf32, #tpu.memory_space<vmem>>, vector<16x2x8xf32>
    tpu.vector_store %arg5[%c0_12, %c0_13, %c0_14], %12 {strides = array<i32>} : memref<16x2x8xf32, #tpu.memory_space<vmem>>, vector<16x2x8xf32>,
    return
  }
  func.func @transform_0(%arg0: i32, %arg1: i32) -> (i32, i32, i32) {
    %c0_i32 = arith.constant 0 : i32
    %c0_i32_0 = arith.constant 0 : i32
    return %arg0, %arg1, %c0_i32 : i32, i32, i32
  }
  func.func @transform_1(%arg0: i32, %arg1: i32) -> (i32, i32, i32) {
    %c0_i32 = arith.constant 0 : i32
    %c0_i32_0 = arith.constant 0 : i32
    return %arg0, %arg1, %c0_i32 : i32, i32, i32
  }
  func.func @transform_2(%arg0: i32, %arg1: i32) -> (i32, i32, i32) {
    %c0_i32 = arith.constant 0 : i32
    %c0_i32_0 = arith.constant 0 : i32
    %c0_i32_1 = arith.constant 0 : i32
    return %arg0, %c0_i32, %c0_i32_0 : i32, i32, i32
  }
  func.func @transform_3(%arg0: i32, %arg1: i32) -> (i32, i32, i32) {
    %c0_i32 = arith.constant 0 : i32
    %c0_i32_0 = arith.constant 0 : i32
    return %arg0, %arg1, %c0_i32 : i32, i32, i32
  }
}

</mosaic_0001>

<llo_original>
// kernel: tpu_custom_call.1
$region0: #{tpu_custom_call.1}
  #allocation0 [shape = 'u32[]', space=smem, size = 0x4, offset = 0x4, fixed_abs, tag = 'smem constant byte address 0x4 - core index']
  #allocation1 [shape = 'u32[144,128]{1,0:T(1,128)}', space=vmem, size = 0x12000, scoped, tag = 'internal scratch']
  %s0 = inlined_call_operand.vmem [shape: bf16[32,2,4], index: 0, kind: input, shape index: {}]
  %s1 = inlined_call_operand.vmem [shape: bf16[32,2,4], index: 1, kind: input, shape index: {}]
  %s2 = inlined_call_operand.vmem [shape: bf16[32,4,8], index: 2, kind: input, shape index: {}]
  %s3 = inlined_call_operand.vmem [shape: f32[32,2,8], index: 3, kind: output, shape index: {}]
  %s4 = sld [smem:[#allocation0]]
  $region45: #{tpu_custom_call.1} parent=0
    _
  %s6 = ssub.s32 1, %s4
  %s7 = scalar_select 0, %s6, %s4
  loop: start=0, step=1, limit=4
  $region2: #{tpu_custom_call.1} parent=0 // loop_pre_header
    _
  $region3: #{tpu_custom_call.1} parent=0 // loop_header
    %s9 = sphi 0, %s13
    %p10 = scmp.ge.s32.totalorder %s9, 4
    %s16 = sphi 0, %s28
    %s17 = sphi 0, %s24
    %s18 = sphi 0, %s16
    %s19 = sphi 0, %s17
    %s20 = sphi 0, %s18
    %s21 = sphi 0, %s19
    %s33 = sphi 0, %s35
    %s36 = sphi 0, %s33
    %s37 = sphi 0, %s36
    %s53 = sphi 0, %s37
    %s61 = sphi 0, %s63
    %s64 = sphi 0, %s61
    %s65 = sphi 0, %s64
    %s81 = sphi 0, %s65
    %s87 = sphi 0, %s89
    %s90 = sphi 0, %s87
    %s91 = sphi 0, %s90
    %s107 = sphi 0, %s91
    %s115 = sphi 0, %s117
    %s118 = sphi 0, %s115
    %s119 = sphi 0, %s118
    %s135 = sphi 0, %s119
  $region4: #{tpu_custom_call.1} parent=0 // loop_header_branch
    %12 = sbr.rel (%p10) target = $region8
  $region5: #{tpu_custom_call.1} parent=0 // loop_body
    %s14 = ssub.s32 %s9, 1
    %s15 = ssub.s32 %s9, 2
    %s22 = sadd.s32 1, %s17
    %p23 = scmp.ge.s32.totalorder %s22, 1
    %s24 = scalar_select %p23, 0, %s22
    %s25 = sadd.s32 1, %s16
    %s26 = scalar_select %p23, %s25, %s16
    %p27 = scmp.ge.s32.totalorder %s26, 2
    %s28 = scalar_select %p27, 0, %s26
    %s29 = ssub.s32 %s16, %s28
    %s30 = ssub.s32 %s17, %s24
    %s31 = sor.u32 %s29, %s30
    %p32 = scmp.eq.s32.totalorder %s31, 0
    %s34 = sadd.s32 %s33, 1
    %s35 = scalar_select %p32, %s33, %s34
    %p38 = pneg %p32
    %p39 = scmp.eq.s32.totalorder %s9, 1
    %p40 = por %p38, %p39
    %p41 = scmp.ne.s32.totalorder %s33, %s36
    %p42 = scmp.eq.s32.totalorder %s9, 0
    %p43 = por %p41, %p42
    %p44 = scmp.ne.s32.totalorder %s33, %s36
    %p45 = scmp.eq.s32.totalorder %s14, 1
    %p46 = por %p44, %p45
    %p47 = scmp.ne.s32.totalorder %s36, %s37
    %p48 = scmp.eq.s32.totalorder %s14, 0
    %p49 = por %p47, %p48
    %p50 = scmp.ne.s32.totalorder %s36, %s37
    %p51 = scmp.eq.s32.totalorder %s15, 1
    %p52 = por %p50, %p51
    %p54 = scmp.ne.s32.totalorder %s37, %s53
    %p55 = scmp.eq.s32.totalorder %s15, 0
    %p56 = por %p54, %p55
    %s57 = ssub.s32 %s16, %s28
    %s58 = ssub.s32 %s17, %s24
    %s59 = sor.u32 %s57, %s58
    %p60 = scmp.eq.s32.totalorder %s59, 0
    %s62 = sadd.s32 %s61, 1
    %s63 = scalar_select %p60, %s61, %s62
    %p66 = pneg %p60
    %p67 = scmp.eq.s32.totalorder %s9, 1
    %p68 = por %p66, %p67
    %p69 = scmp.ne.s32.totalorder %s61, %s64
    %p70 = scmp.eq.s32.totalorder %s9, 0
    %p71 = por %p69, %p70
    %p72 = scmp.ne.s32.totalorder %s61, %s64
    %p73 = scmp.eq.s32.totalorder %s14, 1
    %p74 = por %p72, %p73
    %p75 = scmp.ne.s32.totalorder %s64, %s65
    %p76 = scmp.eq.s32.totalorder %s14, 0
    %p77 = por %p75, %p76
    %p78 = scmp.ne.s32.totalorder %s64, %s65
    %p79 = scmp.eq.s32.totalorder %s15, 1
    %p80 = por %p78, %p79
    %p82 = scmp.ne.s32.totalorder %s65, %s81
    %p83 = scmp.eq.s32.totalorder %s15, 0
    %p84 = por %p82, %p83
    %s85 = ssub.s32 %s16, %s28
    %p86 = scmp.eq.s32.totalorder %s85, 0
    %s88 = sadd.s32 %s87, 1
    %s89 = scalar_select %p86, %s87, %s88
    %p92 = pneg %p86
    %p93 = scmp.eq.s32.totalorder %s9, 1
    %p94 = por %p92, %p93
    %p95 = scmp.ne.s32.totalorder %s87, %s90
    %p96 = scmp.eq.s32.totalorder %s9, 0
    %p97 = por %p95, %p96
    %p98 = scmp.ne.s32.totalorder %s87, %s90
    %p99 = scmp.eq.s32.totalorder %s14, 1
    %p100 = por %p98, %p99
    %p101 = scmp.ne.s32.totalorder %s90, %s91
    %p102 = scmp.eq.s32.totalorder %s14, 0
    %p103 = por %p101, %p102
    %p104 = scmp.ne.s32.totalorder %s90, %s91
    %p105 = scmp.eq.s32.totalorder %s15, 1
    %p106 = por %p104, %p105
    %p108 = scmp.ne.s32.totalorder %s91, %s107
    %p109 = scmp.eq.s32.totalorder %s15, 0
    %p110 = por %p108, %p109
    %s111 = ssub.s32 %s16, %s28
    %s112 = ssub.s32 %s17, %s24
    %s113 = sor.u32 %s111, %s112
    %p114 = scmp.eq.s32.totalorder %s113, 0
    %s116 = sadd.s32 %s115, 1
    %s117 = scalar_select %p114, %s115, %s116
    %p120 = pneg %p114
    %p121 = scmp.eq.s32.totalorder %s9, 1
    %p122 = por %p120, %p121
    %p123 = scmp.ne.s32.totalorder %s115, %s118
    %p124 = scmp.eq.s32.totalorder %s9, 0
    %p125 = por %p123, %p124
    %p126 = scmp.ne.s32.totalorder %s115, %s118
    %p127 = scmp.eq.s32.totalorder %s14, 1
    %p128 = por %p126, %p127
    %p129 = scmp.ne.s32.totalorder %s118, %s119
    %p130 = scmp.eq.s32.totalorder %s14, 0
    %p131 = por %p129, %p130
    %p132 = scmp.ne.s32.totalorder %s118, %s119
    %p133 = scmp.eq.s32.totalorder %s15, 1
    %p134 = por %p132, %p133
    %p136 = scmp.ne.s32.totalorder %s119, %s135
    %p137 = scmp.eq.s32.totalorder %s15, 0
    %p138 = por %p136, %p137
    %p139 = scmp.le.s32.totalorder 1, %s9
    %p140 = scmp.lt.s32.totalorder %s9, 3
    %p141 = pnand %p139, %p140
    %p142 = pneg %p141
    // Predicated region
    $region9: #{tpu_custom_call.1} parent=5 // pred_check
      _
    $region10: #{tpu_custom_call.1} parent=5 // pred_check_branch
      %144 = sbr.rel (%p141) target = $region12
    $region11: #{tpu_custom_call.1} parent=5 // pred_region
      %s145 = ssub.s32 %s9, 1
    $region12: #{tpu_custom_call.1} parent=5 // pred_fallthru
      _
    %p146 = scmp.lt.s32.totalorder %s9, 2
    // Predicated region
    $region13: #{tpu_custom_call.1} parent=5 // pred_check
      %p147 = pneg %p146
    $region14: #{tpu_custom_call.1} parent=5 // pred_check_branch
      %149 = sbr.rel (%p147) target = $region16
    $region15: #{tpu_custom_call.1} parent=5 // pred_region
      // Predicated region
      $region17: #{tpu_custom_call.1} parent=15 // pred_check
        %p150 = pneg %p43
      $region18: #{tpu_custom_call.1} parent=15 // pred_check_branch
        %152 = sbr.rel (%p150) target = $region20
      $region19: #{tpu_custom_call.1} parent=15 // pred_region
        %s153 = smul.u32 16, %s16
        %p154 = scmp.lt.s32.totalorder %s153, 31
        %s155 = scalar_select %p154, %s153, 31
        %p156 = scmp.lt.s32.totalorder %s17, 0
        %s157 = scalar_select %p156, %s17, 0
        %s158 = sadd.s32 %s157, %s155
        %s159 = scalar_lea.vmem %s0, %s158
        %s160 = smul.u32 16, %s16
      $region20: #{tpu_custom_call.1} parent=15 // pred_fallthru
        _
      // Predicated region
      $region21: #{tpu_custom_call.1} parent=15 // pred_check
        %p161 = pneg %p71
      $region22: #{tpu_custom_call.1} parent=15 // pred_check_branch
        %163 = sbr.rel (%p161) target = $region24
      $region23: #{tpu_custom_call.1} parent=15 // pred_region
        %s164 = smul.u32 16, %s16
        %p165 = scmp.lt.s32.totalorder %s164, 31
        %s166 = scalar_select %p165, %s164, 31
        %p167 = scmp.lt.s32.totalorder %s17, 0
        %s168 = scalar_select %p167, %s17, 0
        %s169 = sadd.s32 %s168, %s166
        %s170 = scalar_lea.vmem %s1, %s169
        %s171 = smul.u32 16, %s16
      $region24: #{tpu_custom_call.1} parent=15 // pred_fallthru
        _
      // Predicated region
      $region25: #{tpu_custom_call.1} parent=15 // pred_check
        %p172 = pneg %p97
      $region26: #{tpu_custom_call.1} parent=15 // pred_check_branch
        %174 = sbr.rel (%p172) target = $region28
      $region27: #{tpu_custom_call.1} parent=15 // pred_region
        %s175 = smul.u32 16, %s16
        %p176 = scmp.lt.s32.totalorder %s175, 31
        %s177 = scalar_select %p176, %s175, 31
        %s178 = smul.addr %s177, 2
        %s179 = scalar_lea.vmem %s2, %s178
        %s180 = smul.u32 16, %s16
      $region28: #{tpu_custom_call.1} parent=15 // pred_fallthru
        _
    $region16: #{tpu_custom_call.1} parent=5 // pred_fallthru
      _
    %p181 = scmp.le.s32.totalorder 1, %s9
    %p182 = scmp.lt.s32.totalorder %s9, 3
    %p183 = pnand %p181, %p182
    %p184 = pneg %p183
    // Predicated region
    $region29: #{tpu_custom_call.1} parent=5 // pred_check
      _
    $region30: #{tpu_custom_call.1} parent=5 // pred_check_branch
      %186 = sbr.rel (%p183) target = $region32
    $region31: #{tpu_custom_call.1} parent=5 // pred_region
      %s187 = ssub.s32 %s9, 1
      %s188 = smul.u32 16, %s18
      %p189 = scmp.lt.s32.totalorder %s188, 31
      %s190 = scalar_select %p189, %s188, 31
      %p191 = scmp.lt.s32.totalorder %s19, 0
      %s192 = scalar_select %p191, %s19, 0
      %s193 = sadd.s32 %s192, %s190
      %s194 = scalar_lea.vmem %s0, %s193
      %p195 = pneg %p49
      %p196 = pneg %p46
      %s197 = smul.u32 16, %s18
      %p198 = scmp.lt.s32.totalorder %s197, 31
      %s199 = scalar_select %p198, %s197, 31
      %p200 = scmp.lt.s32.totalorder %s19, 0
      %s201 = scalar_select %p200, %s19, 0
      %s202 = sadd.s32 %s201, %s199
      %s203 = scalar_lea.vmem %s1, %s202
      %p204 = pneg %p77
      %p205 = pneg %p74
      %s206 = smul.u32 16, %s18
      %p207 = scmp.lt.s32.totalorder %s206, 31
      %s208 = scalar_select %p207, %s206, 31
      %s209 = smul.addr %s208, 2
      %s210 = scalar_lea.vmem %s2, %s209
      %p211 = pneg %p103
      %p212 = pneg %p100
      %p213 = pneg %p131
      %p214 = pneg %p128
      %s215 = smul.u32 16, %s18
      %p216 = scmp.lt.s32.totalorder %s215, 31
      %s217 = scalar_select %p216, %s215, 31
      %p218 = scmp.lt.s32.totalorder %s19, 0
      %s219 = scalar_select %p218, %s19, 0
      %s220 = sadd.s32 %s219, %s217
      %s221 = smul.addr %s220, 2
      %s222 = scalar_lea.vmem %s3, %s221
      %s223 = smul.u32 16, %s18
      %p224 = scmp.lt.s32.totalorder %s223, 31
      %s225 = scalar_select %p224, %s223, 31
      %p226 = scmp.lt.s32.totalorder %s19, 0
      %s227 = scalar_select %p226, %s19, 0
      %s228 = sadd.s32 %s227, %s225
      %s229 = scalar_lea.vmem %s0, %s228
      %s230 = smul.u32 16, %s18
      %s231 = smul.u32 16, %s18
      %p232 = scmp.lt.s32.totalorder %s231, 31
      %s233 = scalar_select %p232, %s231, 31
      %p234 = scmp.lt.s32.totalorder %s19, 0
      %s235 = scalar_select %p234, %s19, 0
      %s236 = sadd.s32 %s235, %s233
      %s237 = scalar_lea.vmem %s1, %s236
      %s238 = smul.u32 16, %s18
      %s239 = smul.u32 16, %s18
      %p240 = scmp.lt.s32.totalorder %s239, 31
      %s241 = scalar_select %p240, %s239, 31
      %s242 = smul.addr %s241, 2
      %s243 = scalar_lea.vmem %s2, %s242
      %s244 = smul.u32 16, %s18
      %s245 = smul.u32 16, %s18
      %p246 = scmp.lt.s32.totalorder %s245, 31
      %s247 = scalar_select %p246, %s245, 31
      %p248 = scmp.lt.s32.totalorder %s19, 0
      %s249 = scalar_select %p248, %s19, 0
      %s250 = sadd.s32 %s249, %s247
      %s251 = smul.addr %s250, 2
      %s252 = scalar_lea.vmem %s3, %s251
      %s253 = smul.u32 16, %s18
      %v255 = vld [vmem:[%s229] sm:$0x1]
      %v256 = vld [vmem:[%s229 + $0x1] sm:$0x1]
      %v257 = vld [vmem:[%s229 + $0x2] sm:$0x1]
      %v258 = vld [vmem:[%s229 + $0x3] sm:$0x1]
      %v259 = vld [vmem:[%s229 + $0x4] sm:$0x1]
      %v260 = vld [vmem:[%s229 + $0x5] sm:$0x1]
      %v261 = vld [vmem:[%s229 + $0x6] sm:$0x1]
      %v262 = vld [vmem:[%s229 + $0x7] sm:$0x1]
      %v263 = vld [vmem:[%s229 + $0x8] sm:$0x1]
      %v264 = vld [vmem:[%s229 + $0x9] sm:$0x1]
      %v265 = vld [vmem:[%s229 + $0xa] sm:$0x1]
      %v266 = vld [vmem:[%s229 + $0xb] sm:$0x1]
      %v267 = vld [vmem:[%s229 + $0xc] sm:$0x1]
      %v268 = vld [vmem:[%s229 + $0xd] sm:$0x1]
      %v269 = vld [vmem:[%s229 + $0xe] sm:$0x1]
      %v270 = vld [vmem:[%s229 + $0xf] sm:$0x1]
      %v271 = vld [vmem:[%s243] sm:$0x3]
      %v272 = vld [vmem:[%s243 + $0x2] sm:$0x3]
      %v273 = vld [vmem:[%s243 + $0x4] sm:$0x3]
      %v274 = vld [vmem:[%s243 + $0x6] sm:$0x3]
      %v275 = vld [vmem:[%s243 + $0x8] sm:$0x3]
      %v276 = vld [vmem:[%s243 + $0xa] sm:$0x3]
      %v277 = vld [vmem:[%s243 + $0xc] sm:$0x3]
      %v278 = vld [vmem:[%s243 + $0xe] sm:$0x3]
      %v279 = vld [vmem:[%s243 + $0x10] sm:$0x3]
      %v280 = vld [vmem:[%s243 + $0x12] sm:$0x3]
      %v281 = vld [vmem:[%s243 + $0x14] sm:$0x3]
      %v282 = vld [vmem:[%s243 + $0x16] sm:$0x3]
      %v283 = vld [vmem:[%s243 + $0x18] sm:$0x3]
      %v284 = vld [vmem:[%s243 + $0x1a] sm:$0x3]
      %v285 = vld [vmem:[%s243 + $0x1c] sm:$0x3]
      %v286 = vld [vmem:[%s243 + $0x1e] sm:$0x3]
      %vm287 = vcmask 31744
      %v289 = vsel %vm287, %v255, 0
      %vm291 = vcmask 1041408
      %v293 = vsel %vm291, %v271, 0
      %295 = vmatprep.subr.bf16.mxu0 0
      %296 = vmatpush1.bf16.msra.mxu0 %v293
      %297 = vmatprep.subr.bf16.mxu0 0
      %298 = vmatpush1.bf16.msra.mxu0 0
      %299 = vmatprep.subr.bf16.mxu0 0
      %300 = vmatpush1.bf16.msra.mxu0 0
      %301 = vmatprep.subr.bf16.mxu0 0
      %302 = vmatpush1.bf16.msra.mxu0 0
      %303 = vmatprep.subr.bf16.mxu0 0
      %304 = vmatpush1.bf16.msra.mxu0 0
      %305 = vmatprep.subr.bf16.mxu0 0
      %306 = vmatpush1.bf16.msra.mxu0 0
      %307 = vmatprep.subr.bf16.mxu0 0
      %308 = vmatpush1.bf16.msra.mxu0 0
      %309 = vmatprep.subr.bf16.mxu0 0
      %310 = vmatpush1.bf16.msra.mxu0 0
      %311 = vmatprep.subr.bf16.mxu0 0
      %312 = vmatpush1.bf16.msra.mxu0 0
      %313 = vmatprep.subr.bf16.mxu0 0
      %314 = vmatpush1.bf16.msra.mxu0 0
      %315 = vmatprep.subr.bf16.mxu0 0
      %316 = vmatpush1.bf16.msra.mxu0 0
      %317 = vmatprep.subr.bf16.mxu0 0
      %318 = vmatpush1.bf16.msra.mxu0 0
      %319 = vmatprep.subr.bf16.mxu0 0
      %320 = vmatpush1.bf16.msra.mxu0 0
      %321 = vmatprep.subr.bf16.mxu0 0
      %322 = vmatpush1.bf16.msra.mxu0 0
      %323 = vmatprep.subr.bf16.mxu0 0
      %324 = vmatpush1.bf16.msra.mxu0 0
      %325 = vmatprep.subr.bf16.mxu0 0
      %326 = vmatpush1.bf16.msra.mxu0 0
      %327 = vmatprep.mubr.bf16.mxu0 0
      %328 = vmatmul.mubr.bf16.gmra.mrb[0].mxu0 %v289
      %v329 = vpop.f32.mrb[0].mxu0
      %v330 = vadd.f32 0.0, %v329
      %v331 = vpop.f32.mrb[0].mxu0
      %v332 = vpop.f32.mrb[0].mxu0
      %v333 = vpop.f32.mrb[0].mxu0
      %334 = vdwg.mxu0
      %v336 = vsel %vm287, %v256, 0
      %v339 = vsel %vm291, %v272, 0
      %341 = vmatprep.subr.bf16.mxu0 0
      %342 = vmatpush1.bf16.msra.mxu0 %v339
      %343 = vmatprep.subr.bf16.mxu0 0
      %344 = vmatpush1.bf16.msra.mxu0 0
      %345 = vmatprep.subr.bf16.mxu0 0
      %346 = vmatpush1.bf16.msra.mxu0 0
      %347 = vmatprep.subr.bf16.mxu0 0
      %348 = vmatpush1.bf16.msra.mxu0 0
      %349 = vmatprep.subr.bf16.mxu0 0
      %350 = vmatpush1.bf16.msra.mxu0 0
      %351 = vmatprep.subr.bf16.mxu0 0
      %352 = vmatpush1.bf16.msra.mxu0 0
      %353 = vmatprep.subr.bf16.mxu0 0
      %354 = vmatpush1.bf16.msra.mxu0 0
      %355 = vmatprep.subr.bf16.mxu0 0
      %356 = vmatpush1.bf16.msra.mxu0 0
      %357 = vmatprep.subr.bf16.mxu0 0
      %358 = vmatpush1.bf16.msra.mxu0 0
      %359 = vmatprep.subr.bf16.mxu0 0
      %360 = vmatpush1.bf16.msra.mxu0 0
      %361 = vmatprep.subr.bf16.mxu0 0
      %362 = vmatpush1.bf16.msra.mxu0 0
      %363 = vmatprep.subr.bf16.mxu0 0
      %364 = vmatpush1.bf16.msra.mxu0 0
      %365 = vmatprep.subr.bf16.mxu0 0
      %366 = vmatpush1.bf16.msra.mxu0 0
      %367 = vmatprep.subr.bf16.mxu0 0
      %368 = vmatpush1.bf16.msra.mxu0 0
      %369 = vmatprep.subr.bf16.mxu0 0
      %370 = vmatpush1.bf16.msra.mxu0 0
      %371 = vmatprep.subr.bf16.mxu0 0
      %372 = vmatpush1.bf16.msra.mxu0 0
      %373 = vmatprep.mubr.bf16.mxu0 0
      %374 = vmatmul.mubr.bf16.gmra.mrb[0].mxu0 %v336
      %v375 = vpop.f32.mrb[0].mxu0
      %v376 = vadd.f32 0.0, %v375
      %v377 = vpop.f32.mrb[0].mxu0
      %v378 = vpop.f32.mrb[0].mxu0
      %v379 = vpop.f32.mrb[0].mxu0
      %380 = vdwg.mxu0
      %v382 = vsel %vm287, %v257, 0
      %v385 = vsel %vm291, %v273, 0
      %387 = vmatprep.subr.bf16.mxu0 0
      %388 = vmatpush1.bf16.msra.mxu0 %v385
      %389 = vmatprep.subr.bf16.mxu0 0
      %390 = vmatpush1.bf16.msra.mxu0 0
      %391 = vmatprep.subr.bf16.mxu0 0
      %392 = vmatpush1.bf16.msra.mxu0 0
      %393 = vmatprep.subr.bf16.mxu0 0
      %394 = vmatpush1.bf16.msra.mxu0 0
      %395 = vmatprep.subr.bf16.mxu0 0
      %396 = vmatpush1.bf16.msra.mxu0 0
      %397 = vmatprep.subr.bf16.mxu0 0
      %398 = vmatpush1.bf16.msra.mxu0 0
      %399 = vmatprep.subr.bf16.mxu0 0
      %400 = vmatpush1.bf16.msra.mxu0 0
      %401 = vmatprep.subr.bf16.mxu0 0
      %402 = vmatpush1.bf16.msra.mxu0 0
      %403 = vmatprep.subr.bf16.mxu0 0
      %404 = vmatpush1.bf16.msra.mxu0 0
      %405 = vmatprep.subr.bf16.mxu0 0
      %406 = vmatpush1.bf16.msra.mxu0 0
      %407 = vmatprep.subr.bf16.mxu0 0
      %408 = vmatpush1.bf16.msra.mxu0 0
      %409 = vmatprep.subr.bf16.mxu0 0
      %410 = vmatpush1.bf16.msra.mxu0 0
      %411 = vmatprep.subr.bf16.mxu0 0
      %412 = vmatpush1.bf16.msra.mxu0 0
      %413 = vmatprep.subr.bf16.mxu0 0
      %414 = vmatpush1.bf16.msra.mxu0 0
      %415 = vmatprep.subr.bf16.mxu0 0
      %416 = vmatpush1.bf16.msra.mxu0 0
      %417 = vmatprep.subr.bf16.mxu0 0
      %418 = vmatpush1.bf16.msra.mxu0 0
      %419 = vmatprep.mubr.bf16.mxu0 0
      %420 = vmatmul.mubr.bf16.gmra.mrb[0].mxu0 %v382
      %v421 = vpop.f32.mrb[0].mxu0
      %v422 = vadd.f32 0.0, %v421
      %v423 = vpop.f32.mrb[0].mxu0
      %v424 = vpop.f32.mrb[0].mxu0
      %v425 = vpop.f32.mrb[0].mxu0
      %426 = vdwg.mxu0
      %v428 = vsel %vm287, %v258, 0
      %v431 = vsel %vm291, %v274, 0
      %433 = vmatprep.subr.bf16.mxu0 0
      %434 = vmatpush1.bf16.msra.mxu0 %v431
      %435 = vmatprep.subr.bf16.mxu0 0
      %436 = vmatpush1.bf16.msra.mxu0 0
      %437 = vmatprep.subr.bf16.mxu0 0
      %438 = vmatpush1.bf16.msra.mxu0 0
      %439 = vmatprep.subr.bf16.mxu0 0
      %440 = vmatpush1.bf16.msra.mxu0 0
      %441 = vmatprep.subr.bf16.mxu0 0
      %442 = vmatpush1.bf16.msra.mxu0 0
      %443 = vmatprep.subr.bf16.mxu0 0
      %444 = vmatpush1.bf16.msra.mxu0 0
      %445 = vmatprep.subr.bf16.mxu0 0
      %446 = vmatpush1.bf16.msra.mxu0 0
      %447 = vmatprep.subr.bf16.mxu0 0
      %448 = vmatpush1.bf16.msra.mxu0 0
      %449 = vmatprep.subr.bf16.mxu0 0
      %450 = vmatpush1.bf16.msra.mxu0 0
      %451 = vmatprep.subr.bf16.mxu0 0
      %452 = vmatpush1.bf16.msra.mxu0 0
      %453 = vmatprep.subr.bf16.mxu0 0
      %454 = vmatpush1.bf16.msra.mxu0 0
      %455 = vmatprep.subr.bf16.mxu0 0
      %456 = vmatpush1.bf16.msra.mxu0 0
      %457 = vmatprep.subr.bf16.mxu0 0
      %458 = vmatpush1.bf16.msra.mxu0 0
      %459 = vmatprep.subr.bf16.mxu0 0
      %460 = vmatpush1.bf16.msra.mxu0 0
      %461 = vmatprep.subr.bf16.mxu0 0
      %462 = vmatpush1.bf16.msra.mxu0 0
      %463 = vmatprep.subr.bf16.mxu0 0
      %464 = vmatpush1.bf16.msra.mxu0 0
      %465 = vmatprep.mubr.bf16.mxu0 0
      %466 = vmatmul.mubr.bf16.gmra.mrb[0].mxu0 %v428
      %v467 = vpop.f32.mrb[0].mxu0
      %v468 = vadd.f32 0.0, %v467
      %v469 = vpop.f32.mrb[0].mxu0
      %v470 = vpop.f32.mrb[0].mxu0
      %v471 = vpop.f32.mrb[0].mxu0
      %472 = vdwg.mxu0
      %v474 = vsel %vm287, %v259, 0
      %v477 = vsel %vm291, %v275, 0
      %479 = vmatprep.subr.bf16.mxu0 0
      %480 = vmatpush1.bf16.msra.mxu0 %v477
      %481 = vmatprep.subr.bf16.mxu0 0
      %482 = vmatpush1.bf16.msra.mxu0 0
      %483 = vmatprep.subr.bf16.mxu0 0
      %484 = vmatpush1.bf16.msra.mxu0 0
      %485 = vmatprep.subr.bf16.mxu0 0
      %486 = vmatpush1.bf16.msra.mxu0 0
      %487 = vmatprep.subr.bf16.mxu0 0
      %488 = vmatpush1.bf16.msra.mxu0 0
      %489 = vmatprep.subr.bf16.mxu0 0
      %490 = vmatpush1.bf16.msra.mxu0 0
      %491 = vmatprep.subr.bf16.mxu0 0
      %492 = vmatpush1.bf16.msra.mxu0 0
      %493 = vmatprep.subr.bf16.mxu0 0
      %494 = vmatpush1.bf16.msra.mxu0 0
      %495 = vmatprep.subr.bf16.mxu0 0
      %496 = vmatpush1.bf16.msra.mxu0 0
      %497 = vmatprep.subr.bf16.mxu0 0
      %498 = vmatpush1.bf16.msra.mxu0 0
      %499 = vmatprep.subr.bf16.mxu0 0
      %500 = vmatpush1.bf16.msra.mxu0 0
      %501 = vmatprep.subr.bf16.mxu0 0
      %502 = vmatpush1.bf16.msra.mxu0 0
      %503 = vmatprep.subr.bf16.mxu0 0
      %504 = vmatpush1.bf16.msra.mxu0 0
      %505 = vmatprep.subr.bf16.mxu0 0
      %506 = vmatpush1.bf16.msra.mxu0 0
      %507 = vmatprep.subr.bf16.mxu0 0
      %508 = vmatpush1.bf16.msra.mxu0 0
      %509 = vmatprep.subr.bf16.mxu0 0
      %510 = vmatpush1.bf16.msra.mxu0 0
      %511 = vmatprep.mubr.bf16.mxu0 0
      %512 = vmatmul.mubr.bf16.gmra.mrb[0].mxu0 %v474
      %v513 = vpop.f32.mrb[0].mxu0
      %v514 = vadd.f32 0.0, %v513
      %v515 = vpop.f32.mrb[0].mxu0
      %v516 = vpop.f32.mrb[0].mxu0
      %v517 = vpop.f32.mrb[0].mxu0
      %518 = vdwg.mxu0
      %v520 = vsel %vm287, %v260, 0
      %v523 = vsel %vm291, %v276, 0
      %525 = vmatprep.subr.bf16.mxu0 0
      %526 = vmatpush1.bf16.msra.mxu0 %v523
      %527 = vmatprep.subr.bf16.mxu0 0
      %528 = vmatpush1.bf16.msra.mxu0 0
      %529 = vmatprep.subr.bf16.mxu0 0
      %530 = vmatpush1.bf16.msra.mxu0 0
      %531 = vmatprep.subr.bf16.mxu0 0
      %532 = vmatpush1.bf16.msra.mxu0 0
      %533 = vmatprep.subr.bf16.mxu0 0
      %534 = vmatpush1.bf16.msra.mxu0 0
      %535 = vmatprep.subr.bf16.mxu0 0
      %536 = vmatpush1.bf16.msra.mxu0 0
      %537 = vmatprep.subr.bf16.mxu0 0
      %538 = vmatpush1.bf16.msra.mxu0 0
      %539 = vmatprep.subr.bf16.mxu0 0
      %540 = vmatpush1.bf16.msra.mxu0 0
      %541 = vmatprep.subr.bf16.mxu0 0
      %542 = vmatpush1.bf16.msra.mxu0 0
      %543 = vmatprep.subr.bf16.mxu0 0
      %544 = vmatpush1.bf16.msra.mxu0 0
      %545 = vmatprep.subr.bf16.mxu0 0
      %546 = vmatpush1.bf16.msra.mxu0 0
      %547 = vmatprep.subr.bf16.mxu0 0
      %548 = vmatpush1.bf16.msra.mxu0 0
      %549 = vmatprep.subr.bf16.mxu0 0
      %550 = vmatpush1.bf16.msra.mxu0 0
      %551 = vmatprep.subr.bf16.mxu0 0
      %552 = vmatpush1.bf16.msra.mxu0 0
      %553 = vmatprep.subr.bf16.mxu0 0
      %554 = vmatpush1.bf16.msra.mxu0 0
      %555 = vmatprep.subr.bf16.mxu0 0
      %556 = vmatpush1.bf16.msra.mxu0 0
      %557 = vmatprep.mubr.bf16.mxu0 0
      %558 = vmatmul.mubr.bf16.gmra.mrb[0].mxu0 %v520
      %v559 = vpop.f32.mrb[0].mxu0
      %v560 = vadd.f32 0.0, %v559
      %v561 = vpop.f32.mrb[0].mxu0
      %v562 = vpop.f32.mrb[0].mxu0
      %v563 = vpop.f32.mrb[0].mxu0
      %564 = vdwg.mxu0
      %v566 = vsel %vm287, %v261, 0
      %v569 = vsel %vm291, %v277, 0
      %571 = vmatprep.subr.bf16.mxu0 0
      %572 = vmatpush1.bf16.msra.mxu0 %v569
      %573 = vmatprep.subr.bf16.mxu0 0
      %574 = vmatpush1.bf16.msra.mxu0 0
      %575 = vmatprep.subr.bf16.mxu0 0
      %576 = vmatpush1.bf16.msra.mxu0 0
      %577 = vmatprep.subr.bf16.mxu0 0
      %578 = vmatpush1.bf16.msra.mxu0 0
      %579 = vmatprep.subr.bf16.mxu0 0
      %580 = vmatpush1.bf16.msra.mxu0 0
      %581 = vmatprep.subr.bf16.mxu0 0
      %582 = vmatpush1.bf16.msra.mxu0 0
      %583 = vmatprep.subr.bf16.mxu0 0
      %584 = vmatpush1.bf16.msra.mxu0 0
      %585 = vmatprep.subr.bf16.mxu0 0
      %586 = vmatpush1.bf16.msra.mxu0 0
      %587 = vmatprep.subr.bf16.mxu0 0
      %588 = vmatpush1.bf16.msra.mxu0 0
      %589 = vmatprep.subr.bf16.mxu0 0
      %590 = vmatpush1.bf16.msra.mxu0 0
      %591 = vmatprep.subr.bf16.mxu0 0
      %592 = vmatpush1.bf16.msra.mxu0 0
      %593 = vmatprep.subr.bf16.mxu0 0
      %594 = vmatpush1.bf16.msra.mxu0 0
      %595 = vmatprep.subr.bf16.mxu0 0
      %596 = vmatpush1.bf16.msra.mxu0 0
      %597 = vmatprep.subr.bf16.mxu0 0
      %598 = vmatpush1.bf16.msra.mxu0 0
      %599 = vmatprep.subr.bf16.mxu0 0
      %600 = vmatpush1.bf16.msra.mxu0 0
      %601 = vmatprep.subr.bf16.mxu0 0
      %602 = vmatpush1.bf16.msra.mxu0 0
      %603 = vmatprep.mubr.bf16.mxu0 0
      %604 = vmatmul.mubr.bf16.gmra.mrb[0].mxu0 %v566
      %v605 = vpop.f32.mrb[0].mxu0
      %v606 = vadd.f32 0.0, %v605
      %v607 = vpop.f32.mrb[0].mxu0
      %v608 = vpop.f32.mrb[0].mxu0
      %v609 = vpop.f32.mrb[0].mxu0
      %610 = vdwg.mxu0
      %v612 = vsel %vm287, %v262, 0
      %v615 = vsel %vm291, %v278, 0
      %617 = vmatprep.subr.bf16.mxu0 0
      %618 = vmatpush1.bf16.msra.mxu0 %v615
      %619 = vmatprep.subr.bf16.mxu0 0
      %620 = vmatpush1.bf16.msra.mxu0 0
      %621 = vmatprep.subr.bf16.mxu0 0
      %622 = vmatpush1.bf16.msra.mxu0 0
      %623 = vmatprep.subr.bf16.mxu0 0
      %624 = vmatpush1.bf16.msra.mxu0 0
      %625 = vmatprep.subr.bf16.mxu0 0
      %626 = vmatpush1.bf16.msra.mxu0 0
      %627 = vmatprep.subr.bf16.mxu0 0
      %628 = vmatpush1.bf16.msra.mxu0 0
      %629 = vmatprep.subr.bf16.mxu0 0
      %630 = vmatpush1.bf16.msra.mxu0 0
      %631 = vmatprep.subr.bf16.mxu0 0
      %632 = vmatpush1.bf16.msra.mxu0 0
      %633 = vmatprep.subr.bf16.mxu0 0
      %634 = vmatpush1.bf16.msra.mxu0 0
      %635 = vmatprep.subr.bf16.mxu0 0
      %636 = vmatpush1.bf16.msra.mxu0 0
      %637 = vmatprep.subr.bf16.mxu0 0
      %638 = vmatpush1.bf16.msra.mxu0 0
      %639 = vmatprep.subr.bf16.mxu0 0
      %640 = vmatpush1.bf16.msra.mxu0 0
      %641 = vmatprep.subr.bf16.mxu0 0
      %642 = vmatpush1.bf16.msra.mxu0 0
      %643 = vmatprep.subr.bf16.mxu0 0
      %644 = vmatpush1.bf16.msra.mxu0 0
      %645 = vmatprep.subr.bf16.mxu0 0
      %646 = vmatpush1.bf16.msra.mxu0 0
      %647 = vmatprep.subr.bf16.mxu0 0
      %648 = vmatpush1.bf16.msra.mxu0 0
      %649 = vmatprep.mubr.bf16.mxu0 0
      %650 = vmatmul.mubr.bf16.gmra.mrb[0].mxu0 %v612
      %v651 = vpop.f32.mrb[0].mxu0
      %v652 = vadd.f32 0.0, %v651
      %v653 = vpop.f32.mrb[0].mxu0
      %v654 = vpop.f32.mrb[0].mxu0
      %v655 = vpop.f32.mrb[0].mxu0
      %656 = vdwg.mxu0
      %v658 = vsel %vm287, %v263, 0
      %v661 = vsel %vm291, %v279, 0
      %663 = vmatprep.subr.bf16.mxu0 0
      %664 = vmatpush1.bf16.msra.mxu0 %v661
      %665 = vmatprep.subr.bf16.mxu0 0
      %666 = vmatpush1.bf16.msra.mxu0 0
      %667 = vmatprep.subr.bf16.mxu0 0
      %668 = vmatpush1.bf16.msra.mxu0 0
      %669 = vmatprep.subr.bf16.mxu0 0
      %670 = vmatpush1.bf16.msra.mxu0 0
      %671 = vmatprep.subr.bf16.mxu0 0
      %672 = vmatpush1.bf16.msra.mxu0 0
      %673 = vmatprep.subr.bf16.mxu0 0
      %674 = vmatpush1.bf16.msra.mxu0 0
      %675 = vmatprep.subr.bf16.mxu0 0
      %676 = vmatpush1.bf16.msra.mxu0 0
      %677 = vmatprep.subr.bf16.mxu0 0
      %678 = vmatpush1.bf16.msra.mxu0 0
      %679 = vmatprep.subr.bf16.mxu0 0
      %680 = vmatpush1.bf16.msra.mxu0 0
      %681 = vmatprep.subr.bf16.mxu0 0
      %682 = vmatpush1.bf16.msra.mxu0 0
      %683 = vmatprep.subr.bf16.mxu0 0
      %684 = vmatpush1.bf16.msra.mxu0 0
      %685 = vmatprep.subr.bf16.mxu0 0
      %686 = vmatpush1.bf16.msra.mxu0 0
      %687 = vmatprep.subr.bf16.mxu0 0
      %688 = vmatpush1.bf16.msra.mxu0 0
      %689 = vmatprep.subr.bf16.mxu0 0
      %690 = vmatpush1.bf16.msra.mxu0 0
      %691 = vmatprep.subr.bf16.mxu0 0
      %692 = vmatpush1.bf16.msra.mxu0 0
      %693 = vmatprep.subr.bf16.mxu0 0
      %694 = vmatpush1.bf16.msra.mxu0 0
      %695 = vmatprep.mubr.bf16.mxu0 0
      %696 = vmatmul.mubr.bf16.gmra.mrb[0].mxu0 %v658
      %v697 = vpop.f32.mrb[0].mxu0
      %v698 = vadd.f32 0.0, %v697
      %v699 = vpop.f32.mrb[0].mxu0
      %v700 = vpop.f32.mrb[0].mxu0
      %v701 = vpop.f32.mrb[0].mxu0
      %702 = vdwg.mxu0
      %v704 = vsel %vm287, %v264, 0
      %v707 = vsel %vm291, %v280, 0
      %709 = vmatprep.subr.bf16.mxu0 0
      %710 = vmatpush1.bf16.msra.mxu0 %v707
      %711 = vmatprep.subr.bf16.mxu0 0
      %712 = vmatpush1.bf16.msra.mxu0 0
      %713 = vmatprep.subr.bf16.mxu0 0
      %714 = vmatpush1.bf16.msra.mxu0 0
      %715 = vmatprep.subr.bf16.mxu0 0
      %716 = vmatpush1.bf16.msra.mxu0 0
      %717 = vmatprep.subr.bf16.mxu0 0
      %718 = vmatpush1.bf16.msra.mxu0 0
      %719 = vmatprep.subr.bf16.mxu0 0
      %720 = vmatpush1.bf16.msra.mxu0 0
      %721 = vmatprep.subr.bf16.mxu0 0
      %722 = vmatpush1.bf16.msra.mxu0 0
      %723 = vmatprep.subr.bf16.mxu0 0
      %724 = vmatpush1.bf16.msra.mxu0 0
      %725 = vmatprep.subr.bf16.mxu0 0
      %726 = vmatpush1.bf16.msra.mxu0 0
      %727 = vmatprep.subr.bf16.mxu0 0
      %728 = vmatpush1.bf16.msra.mxu0 0
      %729 = vmatprep.subr.bf16.mxu0 0
      %730 = vmatpush1.bf16.msra.mxu0 0
      %731 = vmatprep.subr.bf16.mxu0 0
      %732 = vmatpush1.bf16.msra.mxu0 0
      %733 = vmatprep.subr.bf16.mxu0 0
      %734 = vmatpush1.bf16.msra.mxu0 0
      %735 = vmatprep.subr.bf16.mxu0 0
      %736 = vmatpush1.bf16.msra.mxu0 0
      %737 = vmatprep.subr.bf16.mxu0 0
      %738 = vmatpush1.bf16.msra.mxu0 0
      %739 = vmatprep.subr.bf16.mxu0 0
      %740 = vmatpush1.bf16.msra.mxu0 0
      %741 = vmatprep.mubr.bf16.mxu0 0
      %742 = vmatmul.mubr.bf16.gmra.mrb[0].mxu0 %v704
      %v743 = vpop.f32.mrb[0].mxu0
      %v744 = vadd.f32 0.0, %v743
      %v745 = vpop.f32.mrb[0].mxu0
      %v746 = vpop.f32.mrb[0].mxu0
      %v747 = vpop.f32.mrb[0].mxu0
      %748 = vdwg.mxu0
      %v750 = vsel %vm287, %v265, 0
      %v753 = vsel %vm291, %v281, 0
      %755 = vmatprep.subr.bf16.mxu0 0
      %756 = vmatpush1.bf16.msra.mxu0 %v753
      %757 = vmatprep.subr.bf16.mxu0 0
      %758 = vmatpush1.bf16.msra.mxu0 0
      %759 = vmatprep.subr.bf16.mxu0 0
      %760 = vmatpush1.bf16.msra.mxu0 0
      %761 = vmatprep.subr.bf16.mxu0 0
      %762 = vmatpush1.bf16.msra.mxu0 0
      %763 = vmatprep.subr.bf16.mxu0 0
      %764 = vmatpush1.bf16.msra.mxu0 0
      %765 = vmatprep.subr.bf16.mxu0 0
      %766 = vmatpush1.bf16.msra.mxu0 0
      %767 = vmatprep.subr.bf16.mxu0 0
      %768 = vmatpush1.bf16.msra.mxu0 0
      %769 = vmatprep.subr.bf16.mxu0 0
      %770 = vmatpush1.bf16.msra.mxu0 0
      %771 = vmatprep.subr.bf16.mxu0 0
      %772 = vmatpush1.bf16.msra.mxu0 0
      %773 = vmatprep.subr.bf16.mxu0 0
      %774 = vmatpush1.bf16.msra.mxu0 0
      %775 = vmatprep.subr.bf16.mxu0 0
      %776 = vmatpush1.bf16.msra.mxu0 0
      %777 = vmatprep.subr.bf16.mxu0 0
      %778 = vmatpush1.bf16.msra.mxu0 0
      %779 = vmatprep.subr.bf16.mxu0 0
      %780 = vmatpush1.bf16.msra.mxu0 0
      %781 = vmatprep.subr.bf16.mxu0 0
      %782 = vmatpush1.bf16.msra.mxu0 0
      %783 = vmatprep.subr.bf16.mxu0 0
      %784 = vmatpush1.bf16.msra.mxu0 0
      %785 = vmatprep.subr.bf16.mxu0 0
      %786 = vmatpush1.bf16.msra.mxu0 0
      %787 = vmatprep.mubr.bf16.mxu0 0
      %788 = vmatmul.mubr.bf16.gmra.mrb[0].mxu0 %v750
      %v789 = vpop.f32.mrb[0].mxu0
      %v790 = vadd.f32 0.0, %v789
      %v791 = vpop.f32.mrb[0].mxu0
      %v792 = vpop.f32.mrb[0].mxu0
      %v793 = vpop.f32.mrb[0].mxu0
      %794 = vdwg.mxu0
      %v796 = vsel %vm287, %v266, 0
      %v799 = vsel %vm291, %v282, 0
      %801 = vmatprep.subr.bf16.mxu0 0
      %802 = vmatpush1.bf16.msra.mxu0 %v799
      %803 = vmatprep.subr.bf16.mxu0 0
      %804 = vmatpush1.bf16.msra.mxu0 0
      %805 = vmatprep.subr.bf16.mxu0 0
      %806 = vmatpush1.bf16.msra.mxu0 0
      %807 = vmatprep.subr.bf16.mxu0 0
      %808 = vmatpush1.bf16.msra.mxu0 0
      %809 = vmatprep.subr.bf16.mxu0 0
      %810 = vmatpush1.bf16.msra.mxu0 0
      %811 = vmatprep.subr.bf16.mxu0 0
      %812 = vmatpush1.bf16.msra.mxu0 0
      %813 = vmatprep.subr.bf16.mxu0 0
      %814 = vmatpush1.bf16.msra.mxu0 0
      %815 = vmatprep.subr.bf16.mxu0 0
      %816 = vmatpush1.bf16.msra.mxu0 0
      %817 = vmatprep.subr.bf16.mxu0 0
      %818 = vmatpush1.bf16.msra.mxu0 0
      %819 = vmatprep.subr.bf16.mxu0 0
      %820 = vmatpush1.bf16.msra.mxu0 0
      %821 = vmatprep.subr.bf16.mxu0 0
      %822 = vmatpush1.bf16.msra.mxu0 0
      %823 = vmatprep.subr.bf16.mxu0 0
      %824 = vmatpush1.bf16.msra.mxu0 0
      %825 = vmatprep.subr.bf16.mxu0 0
      %826 = vmatpush1.bf16.msra.mxu0 0
      %827 = vmatprep.subr.bf16.mxu0 0
      %828 = vmatpush1.bf16.msra.mxu0 0
      %829 = vmatprep.subr.bf16.mxu0 0
      %830 = vmatpush1.bf16.msra.mxu0 0
      %831 = vmatprep.subr.bf16.mxu0 0
      %832 = vmatpush1.bf16.msra.mxu0 0
      %833 = vmatprep.mubr.bf16.mxu0 0
      %834 = vmatmul.mubr.bf16.gmra.mrb[0].mxu0 %v796
      %v835 = vpop.f32.mrb[0].mxu0
      %v836 = vadd.f32 0.0, %v835
      %v837 = vpop.f32.mrb[0].mxu0
      %v838 = vpop.f32.mrb[0].mxu0
      %v839 = vpop.f32.mrb[0].mxu0
      %840 = vdwg.mxu0
      %v842 = vsel %vm287, %v267, 0
      %v845 = vsel %vm291, %v283, 0
      %847 = vmatprep.subr.bf16.mxu0 0
      %848 = vmatpush1.bf16.msra.mxu0 %v845
      %849 = vmatprep.subr.bf16.mxu0 0
      %850 = vmatpush1.bf16.msra.mxu0 0
      %851 = vmatprep.subr.bf16.mxu0 0
      %852 = vmatpush1.bf16.msra.mxu0 0
      %853 = vmatprep.subr.bf16.mxu0 0
      %854 = vmatpush1.bf16.msra.mxu0 0
      %855 = vmatprep.subr.bf16.mxu0 0
      %856 = vmatpush1.bf16.msra.mxu0 0
      %857 = vmatprep.subr.bf16.mxu0 0
      %858 = vmatpush1.bf16.msra.mxu0 0
      %859 = vmatprep.subr.bf16.mxu0 0
      %860 = vmatpush1.bf16.msra.mxu0 0
      %861 = vmatprep.subr.bf16.mxu0 0
      %862 = vmatpush1.bf16.msra.mxu0 0
      %863 = vmatprep.subr.bf16.mxu0 0
      %864 = vmatpush1.bf16.msra.mxu0 0
      %865 = vmatprep.subr.bf16.mxu0 0
      %866 = vmatpush1.bf16.msra.mxu0 0
      %867 = vmatprep.subr.bf16.mxu0 0
      %868 = vmatpush1.bf16.msra.mxu0 0
      %869 = vmatprep.subr.bf16.mxu0 0
      %870 = vmatpush1.bf16.msra.mxu0 0
      %871 = vmatprep.subr.bf16.mxu0 0
      %872 = vmatpush1.bf16.msra.mxu0 0
      %873 = vmatprep.subr.bf16.mxu0 0
      %874 = vmatpush1.bf16.msra.mxu0 0
      %875 = vmatprep.subr.bf16.mxu0 0
      %876 = vmatpush1.bf16.msra.mxu0 0
      %877 = vmatprep.subr.bf16.mxu0 0
      %878 = vmatpush1.bf16.msra.mxu0 0
      %879 = vmatprep.mubr.bf16.mxu0 0
      %880 = vmatmul.mubr.bf16.gmra.mrb[0].mxu0 %v842
      %v881 = vpop.f32.mrb[0].mxu0
      %v882 = vadd.f32 0.0, %v881
      %v883 = vpop.f32.mrb[0].mxu0
      %v884 = vpop.f32.mrb[0].mxu0
      %v885 = vpop.f32.mrb[0].mxu0
      %886 = vdwg.mxu0
      %v888 = vsel %vm287, %v268, 0
      %v891 = vsel %vm291, %v284, 0
      %893 = vmatprep.subr.bf16.mxu0 0
      %894 = vmatpush1.bf16.msra.mxu0 %v891
      %895 = vmatprep.subr.bf16.mxu0 0
      %896 = vmatpush1.bf16.msra.mxu0 0
      %897 = vmatprep.subr.bf16.mxu0 0
      %898 = vmatpush1.bf16.msra.mxu0 0
      %899 = vmatprep.subr.bf16.mxu0 0
      %900 = vmatpush1.bf16.msra.mxu0 0
      %901 = vmatprep.subr.bf16.mxu0 0
      %902 = vmatpush1.bf16.msra.mxu0 0
      %903 = vmatprep.subr.bf16.mxu0 0
      %904 = vmatpush1.bf16.msra.mxu0 0
      %905 = vmatprep.subr.bf16.mxu0 0
      %906 = vmatpush1.bf16.msra.mxu0 0
      %907 = vmatprep.subr.bf16.mxu0 0
      %908 = vmatpush1.bf16.msra.mxu0 0
      %909 = vmatprep.subr.bf16.mxu0 0
      %910 = vmatpush1.bf16.msra.mxu0 0
      %911 = vmatprep.subr.bf16.mxu0 0
      %912 = vmatpush1.bf16.msra.mxu0 0
      %913 = vmatprep.subr.bf16.mxu0 0
      %914 = vmatpush1.bf16.msra.mxu0 0
      %915 = vmatprep.subr.bf16.mxu0 0
      %916 = vmatpush1.bf16.msra.mxu0 0
      %917 = vmatprep.subr.bf16.mxu0 0
      %918 = vmatpush1.bf16.msra.mxu0 0
      %919 = vmatprep.subr.bf16.mxu0 0
      %920 = vmatpush1.bf16.msra.mxu0 0
      %921 = vmatprep.subr.bf16.mxu0 0
      %922 = vmatpush1.bf16.msra.mxu0 0
      %923 = vmatprep.subr.bf16.mxu0 0
      %924 = vmatpush1.bf16.msra.mxu0 0
      %925 = vmatprep.mubr.bf16.mxu0 0
      %926 = vmatmul.mubr.bf16.gmra.mrb[0].mxu0 %v888
      %v927 = vpop.f32.mrb[0].mxu0
      %v928 = vadd.f32 0.0, %v927
      %v929 = vpop.f32.mrb[0].mxu0
      %v930 = vpop.f32.mrb[0].mxu0
      %v931 = vpop.f32.mrb[0].mxu0
      %932 = vdwg.mxu0
      %v934 = vsel %vm287, %v269, 0
      %v937 = vsel %vm291, %v285, 0
      %939 = vmatprep.subr.bf16.mxu0 0
      %940 = vmatpush1.bf16.msra.mxu0 %v937
      %941 = vmatprep.subr.bf16.mxu0 0
      %942 = vmatpush1.bf16.msra.mxu0 0
      %943 = vmatprep.subr.bf16.mxu0 0
      %944 = vmatpush1.bf16.msra.mxu0 0
      %945 = vmatprep.subr.bf16.mxu0 0
      %946 = vmatpush1.bf16.msra.mxu0 0
      %947 = vmatprep.subr.bf16.mxu0 0
      %948 = vmatpush1.bf16.msra.mxu0 0
      %949 = vmatprep.subr.bf16.mxu0 0
      %950 = vmatpush1.bf16.msra.mxu0 0
      %951 = vmatprep.subr.bf16.mxu0 0
      %952 = vmatpush1.bf16.msra.mxu0 0
      %953 = vmatprep.subr.bf16.mxu0 0
      %954 = vmatpush1.bf16.msra.mxu0 0
      %955 = vmatprep.subr.bf16.mxu0 0
      %956 = vmatpush1.bf16.msra.mxu0 0
      %957 = vmatprep.subr.bf16.mxu0 0
      %958 = vmatpush1.bf16.msra.mxu0 0
      %959 = vmatprep.subr.bf16.mxu0 0
      %960 = vmatpush1.bf16.msra.mxu0 0
      %961 = vmatprep.subr.bf16.mxu0 0
      %962 = vmatpush1.bf16.msra.mxu0 0
      %963 = vmatprep.subr.bf16.mxu0 0
      %964 = vmatpush1.bf16.msra.mxu0 0
      %965 = vmatprep.subr.bf16.mxu0 0
      %966 = vmatpush1.bf16.msra.mxu0 0
      %967 = vmatprep.subr.bf16.mxu0 0
      %968 = vmatpush1.bf16.msra.mxu0 0
      %969 = vmatprep.subr.bf16.mxu0 0
      %970 = vmatpush1.bf16.msra.mxu0 0
      %971 = vmatprep.mubr.bf16.mxu0 0
      %972 = vmatmul.mubr.bf16.gmra.mrb[0].mxu0 %v934
      %v973 = vpop.f32.mrb[0].mxu0
      %v974 = vadd.f32 0.0, %v973
      %v975 = vpop.f32.mrb[0].mxu0
      %v976 = vpop.f32.mrb[0].mxu0
      %v977 = vpop.f32.mrb[0].mxu0
      %978 = vdwg.mxu0
      %v980 = vsel %vm287, %v270, 0
      %v983 = vsel %vm291, %v286, 0
      %985 = vmatprep.subr.bf16.mxu0 0
      %986 = vmatpush1.bf16.msra.mxu0 %v983
      %987 = vmatprep.subr.bf16.mxu0 0
      %988 = vmatpush1.bf16.msra.mxu0 0
      %989 = vmatprep.subr.bf16.mxu0 0
      %990 = vmatpush1.bf16.msra.mxu0 0
      %991 = vmatprep.subr.bf16.mxu0 0
      %992 = vmatpush1.bf16.msra.mxu0 0
      %993 = vmatprep.subr.bf16.mxu0 0
      %994 = vmatpush1.bf16.msra.mxu0 0
      %995 = vmatprep.subr.bf16.mxu0 0
      %996 = vmatpush1.bf16.msra.mxu0 0
      %997 = vmatprep.subr.bf16.mxu0 0
      %998 = vmatpush1.bf16.msra.mxu0 0
      %999 = vmatprep.subr.bf16.mxu0 0
      %1000 = vmatpush1.bf16.msra.mxu0 0
      %1001 = vmatprep.subr.bf16.mxu0 0
      %1002 = vmatpush1.bf16.msra.mxu0 0
      %1003 = vmatprep.subr.bf16.mxu0 0
      %1004 = vmatpush1.bf16.msra.mxu0 0
      %1005 = vmatprep.subr.bf16.mxu0 0
      %1006 = vmatpush1.bf16.msra.mxu0 0
      %1007 = vmatprep.subr.bf16.mxu0 0
      %1008 = vmatpush1.bf16.msra.mxu0 0
      %1009 = vmatprep.subr.bf16.mxu0 0
      %1010 = vmatpush1.bf16.msra.mxu0 0
      %1011 = vmatprep.subr.bf16.mxu0 0
      %1012 = vmatpush1.bf16.msra.mxu0 0
      %1013 = vmatprep.subr.bf16.mxu0 0
      %1014 = vmatpush1.bf16.msra.mxu0 0
      %1015 = vmatprep.subr.bf16.mxu0 0
      %1016 = vmatpush1.bf16.msra.mxu0 0
      %1017 = vmatprep.mubr.bf16.mxu0 0
      %1018 = vmatmul.mubr.bf16.gmra.mrb[0].mxu0 %v980
      %v1019 = vpop.f32.mrb[0].mxu0
      %v1020 = vadd.f32 0.0, %v1019
      %v1021 = vpop.f32.mrb[0].mxu0
      %v1022 = vpop.f32.mrb[0].mxu0
      %v1023 = vpop.f32.mrb[0].mxu0
      %1024 = vdwg.mxu0
      %v1025 = vld [vmem:[%s237] sm:$0x1]
      %v1026 = vld [vmem:[%s237 + $0x1] sm:$0x1]
      %v1027 = vld [vmem:[%s237 + $0x2] sm:$0x1]
      %v1028 = vld [vmem:[%s237 + $0x3] sm:$0x1]
      %v1029 = vld [vmem:[%s237 + $0x4] sm:$0x1]
      %v1030 = vld [vmem:[%s237 + $0x5] sm:$0x1]
      %v1031 = vld [vmem:[%s237 + $0x6] sm:$0x1]
      %v1032 = vld [vmem:[%s237 + $0x7] sm:$0x1]
      %v1033 = vld [vmem:[%s237 + $0x8] sm:$0x1]
      %v1034 = vld [vmem:[%s237 + $0x9] sm:$0x1]
      %v1035 = vld [vmem:[%s237 + $0xa] sm:$0x1]
      %v1036 = vld [vmem:[%s237 + $0xb] sm:$0x1]
      %v1037 = vld [vmem:[%s237 + $0xc] sm:$0x1]
      %v1038 = vld [vmem:[%s237 + $0xd] sm:$0x1]
      %v1039 = vld [vmem:[%s237 + $0xe] sm:$0x1]
      %v1040 = vld [vmem:[%s237 + $0xf] sm:$0x1]
      %v1042 = vsel %vm287, %v1025, 0
      %1044 = vmatprep.subr.bf16.mxu0 0
      %1045 = vmatpush1.bf16.msra.mxu0 %v293
      %1046 = vmatprep.subr.bf16.mxu0 0
      %1047 = vmatpush1.bf16.msra.mxu0 0
      %1048 = vmatprep.subr.bf16.mxu0 0
      %1049 = vmatpush1.bf16.msra.mxu0 0
      %1050 = vmatprep.subr.bf16.mxu0 0
      %1051 = vmatpush1.bf16.msra.mxu0 0
      %1052 = vmatprep.subr.bf16.mxu0 0
      %1053 = vmatpush1.bf16.msra.mxu0 0
      %1054 = vmatprep.subr.bf16.mxu0 0
      %1055 = vmatpush1.bf16.msra.mxu0 0
      %1056 = vmatprep.subr.bf16.mxu0 0
      %1057 = vmatpush1.bf16.msra.mxu0 0
      %1058 = vmatprep.subr.bf16.mxu0 0
      %1059 = vmatpush1.bf16.msra.mxu0 0
      %1060 = vmatprep.subr.bf16.mxu0 0
      %1061 = vmatpush1.bf16.msra.mxu0 0
      %1062 = vmatprep.subr.bf16.mxu0 0
      %1063 = vmatpush1.bf16.msra.mxu0 0
      %1064 = vmatprep.subr.bf16.mxu0 0
      %1065 = vmatpush1.bf16.msra.mxu0 0
      %1066 = vmatprep.subr.bf16.mxu0 0
      %1067 = vmatpush1.bf16.msra.mxu0 0
      %1068 = vmatprep.subr.bf16.mxu0 0
      %1069 = vmatpush1.bf16.msra.mxu0 0
      %1070 = vmatprep.subr.bf16.mxu0 0
      %1071 = vmatpush1.bf16.msra.mxu0 0
      %1072 = vmatprep.subr.bf16.mxu0 0
      %1073 = vmatpush1.bf16.msra.mxu0 0
      %1074 = vmatprep.subr.bf16.mxu0 0
      %1075 = vmatpush1.bf16.msra.mxu0 0
      %1076 = vmatprep.mubr.bf16.mxu0 0
      %1077 = vmatmul.mubr.bf16.gmra.mrb[0].mxu0 %v1042
      %v1078 = vpop.f32.mrb[0].mxu0
      %v1079 = vadd.f32 0.0, %v1078
      %v1080 = vpop.f32.mrb[0].mxu0
      %v1081 = vpop.f32.mrb[0].mxu0
      %v1082 = vpop.f32.mrb[0].mxu0
      %1083 = vdwg.mxu0
      %v1085 = vsel %vm287, %v1026, 0
      %1087 = vmatprep.subr.bf16.mxu0 0
      %1088 = vmatpush1.bf16.msra.mxu0 %v339
      %1089 = vmatprep.subr.bf16.mxu0 0
      %1090 = vmatpush1.bf16.msra.mxu0 0
      %1091 = vmatprep.subr.bf16.mxu0 0
      %1092 = vmatpush1.bf16.msra.mxu0 0
      %1093 = vmatprep.subr.bf16.mxu0 0
      %1094 = vmatpush1.bf16.msra.mxu0 0
      %1095 = vmatprep.subr.bf16.mxu0 0
      %1096 = vmatpush1.bf16.msra.mxu0 0
      %1097 = vmatprep.subr.bf16.mxu0 0
      %1098 = vmatpush1.bf16.msra.mxu0 0
      %1099 = vmatprep.subr.bf16.mxu0 0
      %1100 = vmatpush1.bf16.msra.mxu0 0
      %1101 = vmatprep.subr.bf16.mxu0 0
      %1102 = vmatpush1.bf16.msra.mxu0 0
      %1103 = vmatprep.subr.bf16.mxu0 0
      %1104 = vmatpush1.bf16.msra.mxu0 0
      %1105 = vmatprep.subr.bf16.mxu0 0
      %1106 = vmatpush1.bf16.msra.mxu0 0
      %1107 = vmatprep.subr.bf16.mxu0 0
      %1108 = vmatpush1.bf16.msra.mxu0 0
      %1109 = vmatprep.subr.bf16.mxu0 0
      %1110 = vmatpush1.bf16.msra.mxu0 0
      %1111 = vmatprep.subr.bf16.mxu0 0
      %1112 = vmatpush1.bf16.msra.mxu0 0
      %1113 = vmatprep.subr.bf16.mxu0 0
      %1114 = vmatpush1.bf16.msra.mxu0 0
      %1115 = vmatprep.subr.bf16.mxu0 0
      %1116 = vmatpush1.bf16.msra.mxu0 0
      %1117 = vmatprep.subr.bf16.mxu0 0
      %1118 = vmatpush1.bf16.msra.mxu0 0
      %1119 = vmatprep.mubr.bf16.mxu0 0
      %1120 = vmatmul.mubr.bf16.gmra.mrb[0].mxu0 %v1085
      %v1121 = vpop.f32.mrb[0].mxu0
      %v1122 = vadd.f32 0.0, %v1121
      %v1123 = vpop.f32.mrb[0].mxu0
      %v1124 = vpop.f32.mrb[0].mxu0
      %v1125 = vpop.f32.mrb[0].mxu0
      %1126 = vdwg.mxu0
      %v1128 = vsel %vm287, %v1027, 0
      %1130 = vmatprep.subr.bf16.mxu0 0
      %1131 = vmatpush1.bf16.msra.mxu0 %v385
      %1132 = vmatprep.subr.bf16.mxu0 0
      %1133 = vmatpush1.bf16.msra.mxu0 0
      %1134 = vmatprep.subr.bf16.mxu0 0
      %1135 = vmatpush1.bf16.msra.mxu0 0
      %1136 = vmatprep.subr.bf16.mxu0 0
      %1137 = vmatpush1.bf16.msra.mxu0 0
      %1138 = vmatprep.subr.bf16.mxu0 0
      %1139 = vmatpush1.bf16.msra.mxu0 0
      %1140 = vmatprep.subr.bf16.mxu0 0
      %1141 = vmatpush1.bf16.msra.mxu0 0
      %1142 = vmatprep.subr.bf16.mxu0 0
      %1143 = vmatpush1.bf16.msra.mxu0 0
      %1144 = vmatprep.subr.bf16.mxu0 0
      %1145 = vmatpush1.bf16.msra.mxu0 0
      %1146 = vmatprep.subr.bf16.mxu0 0
      %1147 = vmatpush1.bf16.msra.mxu0 0
      %1148 = vmatprep.subr.bf16.mxu0 0
      %1149 = vmatpush1.bf16.msra.mxu0 0
      %1150 = vmatprep.subr.bf16.mxu0 0
      %1151 = vmatpush1.bf16.msra.mxu0 0
      %1152 = vmatprep.subr.bf16.mxu0 0
      %1153 = vmatpush1.bf16.msra.mxu0 0
      %1154 = vmatprep.subr.bf16.mxu0 0
      %1155 = vmatpush1.bf16.msra.mxu0 0
      %1156 = vmatprep.subr.bf16.mxu0 0
      %1157 = vmatpush1.bf16.msra.mxu0 0
      %1158 = vmatprep.subr.bf16.mxu0 0
      %1159 = vmatpush1.bf16.msra.mxu0 0
      %1160 = vmatprep.subr.bf16.mxu0 0
      %1161 = vmatpush1.bf16.msra.mxu0 0
      %1162 = vmatprep.mubr.bf16.mxu0 0
      %1163 = vmatmul.mubr.bf16.gmra.mrb[0].mxu0 %v1128
      %v1164 = vpop.f32.mrb[0].mxu0
      %v1165 = vadd.f32 0.0, %v1164
      %v1166 = vpop.f32.mrb[0].mxu0
      %v1167 = vpop.f32.mrb[0].mxu0
      %v1168 = vpop.f32.mrb[0].mxu0
      %1169 = vdwg.mxu0
      %v1171 = vsel %vm287, %v1028, 0
      %1173 = vmatprep.subr.bf16.mxu0 0
      %1174 = vmatpush1.bf16.msra.mxu0 %v431
      %1175 = vmatprep.subr.bf16.mxu0 0
      %1176 = vmatpush1.bf16.msra.mxu0 0
      %1177 = vmatprep.subr.bf16.mxu0 0
      %1178 = vmatpush1.bf16.msra.mxu0 0
      %1179 = vmatprep.subr.bf16.mxu0 0
      %1180 = vmatpush1.bf16.msra.mxu0 0
      %1181 = vmatprep.subr.bf16.mxu0 0
      %1182 = vmatpush1.bf16.msra.mxu0 0
      %1183 = vmatprep.subr.bf16.mxu0 0
      %1184 = vmatpush1.bf16.msra.mxu0 0
      %1185 = vmatprep.subr.bf16.mxu0 0
      %1186 = vmatpush1.bf16.msra.mxu0 0
      %1187 = vmatprep.subr.bf16.mxu0 0
      %1188 = vmatpush1.bf16.msra.mxu0 0
      %1189 = vmatprep.subr.bf16.mxu0 0
      %1190 = vmatpush1.bf16.msra.mxu0 0
      %1191 = vmatprep.subr.bf16.mxu0 0
      %1192 = vmatpush1.bf16.msra.mxu0 0
      %1193 = vmatprep.subr.bf16.mxu0 0
      %1194 = vmatpush1.bf16.msra.mxu0 0
      %1195 = vmatprep.subr.bf16.mxu0 0
      %1196 = vmatpush1.bf16.msra.mxu0 0
      %1197 = vmatprep.subr.bf16.mxu0 0
      %1198 = vmatpush1.bf16.msra.mxu0 0
      %1199 = vmatprep.subr.bf16.mxu0 0
      %1200 = vmatpush1.bf16.msra.mxu0 0
      %1201 = vmatprep.subr.bf16.mxu0 0
      %1202 = vmatpush1.bf16.msra.mxu0 0
      %1203 = vmatprep.subr.bf16.mxu0 0
      %1204 = vmatpush1.bf16.msra.mxu0 0
      %1205 = vmatprep.mubr.bf16.mxu0 0
      %1206 = vmatmul.mubr.bf16.gmra.mrb[0].mxu0 %v1171
      %v1207 = vpop.f32.mrb[0].mxu0
      %v1208 = vadd.f32 0.0, %v1207
      %v1209 = vpop.f32.mrb[0].mxu0
      %v1210 = vpop.f32.mrb[0].mxu0
      %v1211 = vpop.f32.mrb[0].mxu0
      %1212 = vdwg.mxu0
      %v1214 = vsel %vm287, %v1029, 0
      %1216 = vmatprep.subr.bf16.mxu0 0
      %1217 = vmatpush1.bf16.msra.mxu0 %v477
      %1218 = vmatprep.subr.bf16.mxu0 0
      %1219 = vmatpush1.bf16.msra.mxu0 0
      %1220 = vmatprep.subr.bf16.mxu0 0
      %1221 = vmatpush1.bf16.msra.mxu0 0
      %1222 = vmatprep.subr.bf16.mxu0 0
      %1223 = vmatpush1.bf16.msra.mxu0 0
      %1224 = vmatprep.subr.bf16.mxu0 0
      %1225 = vmatpush1.bf16.msra.mxu0 0
      %1226 = vmatprep.subr.bf16.mxu0 0
      %1227 = vmatpush1.bf16.msra.mxu0 0
      %1228 = vmatprep.subr.bf16.mxu0 0
      %1229 = vmatpush1.bf16.msra.mxu0 0
      %1230 = vmatprep.subr.bf16.mxu0 0
      %1231 = vmatpush1.bf16.msra.mxu0 0
      %1232 = vmatprep.subr.bf16.mxu0 0
      %1233 = vmatpush1.bf16.msra.mxu0 0
      %1234 = vmatprep.subr.bf16.mxu0 0
      %1235 = vmatpush1.bf16.msra.mxu0 0
      %1236 = vmatprep.subr.bf16.mxu0 0
      %1237 = vmatpush1.bf16.msra.mxu0 0
      %1238 = vmatprep.subr.bf16.mxu0 0
      %1239 = vmatpush1.bf16.msra.mxu0 0
      %1240 = vmatprep.subr.bf16.mxu0 0
      %1241 = vmatpush1.bf16.msra.mxu0 0
      %1242 = vmatprep.subr.bf16.mxu0 0
      %1243 = vmatpush1.bf16.msra.mxu0 0
      %1244 = vmatprep.subr.bf16.mxu0 0
      %1245 = vmatpush1.bf16.msra.mxu0 0
      %1246 = vmatprep.subr.bf16.mxu0 0
      %1247 = vmatpush1.bf16.msra.mxu0 0
      %1248 = vmatprep.mubr.bf16.mxu0 0
      %1249 = vmatmul.mubr.bf16.gmra.mrb[0].mxu0 %v1214
      %v1250 = vpop.f32.mrb[0].mxu0
      %v1251 = vadd.f32 0.0, %v1250
      %v1252 = vpop.f32.mrb[0].mxu0
      %v1253 = vpop.f32.mrb[0].mxu0
      %v1254 = vpop.f32.mrb[0].mxu0
      %1255 = vdwg.mxu0
      %v1257 = vsel %vm287, %v1030, 0
      %1259 = vmatprep.subr.bf16.mxu0 0
      %1260 = vmatpush1.bf16.msra.mxu0 %v523
      %1261 = vmatprep.subr.bf16.mxu0 0
      %1262 = vmatpush1.bf16.msra.mxu0 0
      %1263 = vmatprep.subr.bf16.mxu0 0
      %1264 = vmatpush1.bf16.msra.mxu0 0
      %1265 = vmatprep.subr.bf16.mxu0 0
      %1266 = vmatpush1.bf16.msra.mxu0 0
      %1267 = vmatprep.subr.bf16.mxu0 0
      %1268 = vmatpush1.bf16.msra.mxu0 0
      %1269 = vmatprep.subr.bf16.mxu0 0
      %1270 = vmatpush1.bf16.msra.mxu0 0
      %1271 = vmatprep.subr.bf16.mxu0 0
      %1272 = vmatpush1.bf16.msra.mxu0 0
      %1273 = vmatprep.subr.bf16.mxu0 0
      %1274 = vmatpush1.bf16.msra.mxu0 0
      %1275 = vmatprep.subr.bf16.mxu0 0
      %1276 = vmatpush1.bf16.msra.mxu0 0
      %1277 = vmatprep.subr.bf16.mxu0 0
      %1278 = vmatpush1.bf16.msra.mxu0 0
      %1279 = vmatprep.subr.bf16.mxu0 0
      %1280 = vmatpush1.bf16.msra.mxu0 0
      %1281 = vmatprep.subr.bf16.mxu0 0
      %1282 = vmatpush1.bf16.msra.mxu0 0
      %1283 = vmatprep.subr.bf16.mxu0 0
      %1284 = vmatpush1.bf16.msra.mxu0 0
      %1285 = vmatprep.subr.bf16.mxu0 0
      %1286 = vmatpush1.bf16.msra.mxu0 0
      %1287 = vmatprep.subr.bf16.mxu0 0
      %1288 = vmatpush1.bf16.msra.mxu0 0
      %1289 = vmatprep.subr.bf16.mxu0 0
      %1290 = vmatpush1.bf16.msra.mxu0 0
      %1291 = vmatprep.mubr.bf16.mxu0 0
      %1292 = vmatmul.mubr.bf16.gmra.mrb[0].mxu0 %v1257
      %v1293 = vpop.f32.mrb[0].mxu0
      %v1294 = vadd.f32 0.0, %v1293
      %v1295 = vpop.f32.mrb[0].mxu0
      %v1296 = vpop.f32.mrb[0].mxu0
      %v1297 = vpop.f32.mrb[0].mxu0
      %1298 = vdwg.mxu0
      %v1300 = vsel %vm287, %v1031, 0
      %1302 = vmatprep.subr.bf16.mxu0 0
      %1303 = vmatpush1.bf16.msra.mxu0 %v569
      %1304 = vmatprep.subr.bf16.mxu0 0
      %1305 = vmatpush1.bf16.msra.mxu0 0
      %1306 = vmatprep.subr.bf16.mxu0 0
      %1307 = vmatpush1.bf16.msra.mxu0 0
      %1308 = vmatprep.subr.bf16.mxu0 0
      %1309 = vmatpush1.bf16.msra.mxu0 0
      %1310 = vmatprep.subr.bf16.mxu0 0
      %1311 = vmatpush1.bf16.msra.mxu0 0
      %1312 = vmatprep.subr.bf16.mxu0 0
      %1313 = vmatpush1.bf16.msra.mxu0 0
      %1314 = vmatprep.subr.bf16.mxu0 0
      %1315 = vmatpush1.bf16.msra.mxu0 0
      %1316 = vmatprep.subr.bf16.mxu0 0
      %1317 = vmatpush1.bf16.msra.mxu0 0
      %1318 = vmatprep.subr.bf16.mxu0 0
      %1319 = vmatpush1.bf16.msra.mxu0 0
      %1320 = vmatprep.subr.bf16.mxu0 0
      %1321 = vmatpush1.bf16.msra.mxu0 0
      %1322 = vmatprep.subr.bf16.mxu0 0
      %1323 = vmatpush1.bf16.msra.mxu0 0
      %1324 = vmatprep.subr.bf16.mxu0 0
      %1325 = vmatpush1.bf16.msra.mxu0 0
      %1326 = vmatprep.subr.bf16.mxu0 0
      %1327 = vmatpush1.bf16.msra.mxu0 0
      %1328 = vmatprep.subr.bf16.mxu0 0
      %1329 = vmatpush1.bf16.msra.mxu0 0
      %1330 = vmatprep.subr.bf16.mxu0 0
      %1331 = vmatpush1.bf16.msra.mxu0 0
      %1332 = vmatprep.subr.bf16.mxu0 0
      %1333 = vmatpush1.bf16.msra.mxu0 0
      %1334 = vmatprep.mubr.bf16.mxu0 0
      %1335 = vmatmul.mubr.bf16.gmra.mrb[0].mxu0 %v1300
      %v1336 = vpop.f32.mrb[0].mxu0
      %v1337 = vadd.f32 0.0, %v1336
      %v1338 = vpop.f32.mrb[0].mxu0
      %v1339 = vpop.f32.mrb[0].mxu0
      %v1340 = vpop.f32.mrb[0].mxu0
      %1341 = vdwg.mxu0
      %v1343 = vsel %vm287, %v1032, 0
      %1345 = vmatprep.subr.bf16.mxu0 0
      %1346 = vmatpush1.bf16.msra.mxu0 %v615
      %1347 = vmatprep.subr.bf16.mxu0 0
      %1348 = vmatpush1.bf16.msra.mxu0 0
      %1349 = vmatprep.subr.bf16.mxu0 0
      %1350 = vmatpush1.bf16.msra.mxu0 0
      %1351 = vmatprep.subr.bf16.mxu0 0
      %1352 = vmatpush1.bf16.msra.mxu0 0
      %1353 = vmatprep.subr.bf16.mxu0 0
      %1354 = vmatpush1.bf16.msra.mxu0 0
      %1355 = vmatprep.subr.bf16.mxu0 0
      %1356 = vmatpush1.bf16.msra.mxu0 0
      %1357 = vmatprep.subr.bf16.mxu0 0
      %1358 = vmatpush1.bf16.msra.mxu0 0
      %1359 = vmatprep.subr.bf16.mxu0 0
      %1360 = vmatpush1.bf16.msra.mxu0 0
      %1361 = vmatprep.subr.bf16.mxu0 0
      %1362 = vmatpush1.bf16.msra.mxu0 0
      %1363 = vmatprep.subr.bf16.mxu0 0
      %1364 = vmatpush1.bf16.msra.mxu0 0
      %1365 = vmatprep.subr.bf16.mxu0 0
      %1366 = vmatpush1.bf16.msra.mxu0 0
      %1367 = vmatprep.subr.bf16.mxu0 0
      %1368 = vmatpush1.bf16.msra.mxu0 0
      %1369 = vmatprep.subr.bf16.mxu0 0
      %1370 = vmatpush1.bf16.msra.mxu0 0
      %1371 = vmatprep.subr.bf16.mxu0 0
      %1372 = vmatpush1.bf16.msra.mxu0 0
      %1373 = vmatprep.subr.bf16.mxu0 0
      %1374 = vmatpush1.bf16.msra.mxu0 0
      %1375 = vmatprep.subr.bf16.mxu0 0
      %1376 = vmatpush1.bf16.msra.mxu0 0
      %1377 = vmatprep.mubr.bf16.mxu0 0
      %1378 = vmatmul.mubr.bf16.gmra.mrb[0].mxu0 %v1343
      %v1379 = vpop.f32.mrb[0].mxu0
      %v1380 = vadd.f32 0.0, %v1379
      %v1381 = vpop.f32.mrb[0].mxu0
      %v1382 = vpop.f32.mrb[0].mxu0
      %v1383 = vpop.f32.mrb[0].mxu0
      %1384 = vdwg.mxu0
      %v1386 = vsel %vm287, %v1033, 0
      %1388 = vmatprep.subr.bf16.mxu0 0
      %1389 = vmatpush1.bf16.msra.mxu0 %v661
      %1390 = vmatprep.subr.bf16.mxu0 0
      %1391 = vmatpush1.bf16.msra.mxu0 0
      %1392 = vmatprep.subr.bf16.mxu0 0
      %1393 = vmatpush1.bf16.msra.mxu0 0
      %1394 = vmatprep.subr.bf16.mxu0 0
      %1395 = vmatpush1.bf16.msra.mxu0 0
      %1396 = vmatprep.subr.bf16.mxu0 0
      %1397 = vmatpush1.bf16.msra.mxu0 0
      %1398 = vmatprep.subr.bf16.mxu0 0
      %1399 = vmatpush1.bf16.msra.mxu0 0
      %1400 = vmatprep.subr.bf16.mxu0 0
      %1401 = vmatpush1.bf16.msra.mxu0 0
      %1402 = vmatprep.subr.bf16.mxu0 0
      %1403 = vmatpush1.bf16.msra.mxu0 0
      %1404 = vmatprep.subr.bf16.mxu0 0
      %1405 = vmatpush1.bf16.msra.mxu0 0
      %1406 = vmatprep.subr.bf16.mxu0 0
      %1407 = vmatpush1.bf16.msra.mxu0 0
      %1408 = vmatprep.subr.bf16.mxu0 0
      %1409 = vmatpush1.bf16.msra.mxu0 0
      %1410 = vmatprep.subr.bf16.mxu0 0
      %1411 = vmatpush1.bf16.msra.mxu0 0
      %1412 = vmatprep.subr.bf16.mxu0 0
      %1413 = vmatpush1.bf16.msra.mxu0 0
      %1414 = vmatprep.subr.bf16.mxu0 0
      %1415 = vmatpush1.bf16.msra.mxu0 0
      %1416 = vmatprep.subr.bf16.mxu0 0
      %1417 = vmatpush1.bf16.msra.mxu0 0
      %1418 = vmatprep.subr.bf16.mxu0 0
      %1419 = vmatpush1.bf16.msra.mxu0 0
      %1420 = vmatprep.mubr.bf16.mxu0 0
      %1421 = vmatmul.mubr.bf16.gmra.mrb[0].mxu0 %v1386
      %v1422 = vpop.f32.mrb[0].mxu0
      %v1423 = vadd.f32 0.0, %v1422
      %v1424 = vpop.f32.mrb[0].mxu0
      %v1425 = vpop.f32.mrb[0].mxu0
      %v1426 = vpop.f32.mrb[0].mxu0
      %1427 = vdwg.mxu0
      %v1429 = vsel %vm287, %v1034, 0
      %1431 = vmatprep.subr.bf16.mxu0 0
      %1432 = vmatpush1.bf16.msra.mxu0 %v707
      %1433 = vmatprep.subr.bf16.mxu0 0
      %1434 = vmatpush1.bf16.msra.mxu0 0
      %1435 = vmatprep.subr.bf16.mxu0 0
      %1436 = vmatpush1.bf16.msra.mxu0 0
      %1437 = vmatprep.subr.bf16.mxu0 0
      %1438 = vmatpush1.bf16.msra.mxu0 0
      %1439 = vmatprep.subr.bf16.mxu0 0
      %1440 = vmatpush1.bf16.msra.mxu0 0
      %1441 = vmatprep.subr.bf16.mxu0 0
      %1442 = vmatpush1.bf16.msra.mxu0 0
      %1443 = vmatprep.subr.bf16.mxu0 0
      %1444 = vmatpush1.bf16.msra.mxu0 0
      %1445 = vmatprep.subr.bf16.mxu0 0
      %1446 = vmatpush1.bf16.msra.mxu0 0
      %1447 = vmatprep.subr.bf16.mxu0 0
      %1448 = vmatpush1.bf16.msra.mxu0 0
      %1449 = vmatprep.subr.bf16.mxu0 0
      %1450 = vmatpush1.bf16.msra.mxu0 0
      %1451 = vmatprep.subr.bf16.mxu0 0
      %1452 = vmatpush1.bf16.msra.mxu0 0
      %1453 = vmatprep.subr.bf16.mxu0 0
      %1454 = vmatpush1.bf16.msra.mxu0 0
      %1455 = vmatprep.subr.bf16.mxu0 0
      %1456 = vmatpush1.bf16.msra.mxu0 0
      %1457 = vmatprep.subr.bf16.mxu0 0
      %1458 = vmatpush1.bf16.msra.mxu0 0
      %1459 = vmatprep.subr.bf16.mxu0 0
      %1460 = vmatpush1.bf16.msra.mxu0 0
      %1461 = vmatprep.subr.bf16.mxu0 0
      %1462 = vmatpush1.bf16.msra.mxu0 0
      %1463 = vmatprep.mubr.bf16.mxu0 0
      %1464 = vmatmul.mubr.bf16.gmra.mrb[0].mxu0 %v1429
      %v1465 = vpop.f32.mrb[0].mxu0
      %v1466 = vadd.f32 0.0, %v1465
      %v1467 = vpop.f32.mrb[0].mxu0
      %v1468 = vpop.f32.mrb[0].mxu0
      %v1469 = vpop.f32.mrb[0].mxu0
      %1470 = vdwg.mxu0
      %v1472 = vsel %vm287, %v1035, 0
      %1474 = vmatprep.subr.bf16.mxu0 0
      %1475 = vmatpush1.bf16.msra.mxu0 %v753
      %1476 = vmatprep.subr.bf16.mxu0 0
      %1477 = vmatpush1.bf16.msra.mxu0 0
      %1478 = vmatprep.subr.bf16.mxu0 0
      %1479 = vmatpush1.bf16.msra.mxu0 0
      %1480 = vmatprep.subr.bf16.mxu0 0
      %1481 = vmatpush1.bf16.msra.mxu0 0
      %1482 = vmatprep.subr.bf16.mxu0 0
      %1483 = vmatpush1.bf16.msra.mxu0 0
      %1484 = vmatprep.subr.bf16.mxu0 0
      %1485 = vmatpush1.bf16.msra.mxu0 0
      %1486 = vmatprep.subr.bf16.mxu0 0
      %1487 = vmatpush1.bf16.msra.mxu0 0
      %1488 = vmatprep.subr.bf16.mxu0 0
      %1489 = vmatpush1.bf16.msra.mxu0 0
      %1490 = vmatprep.subr.bf16.mxu0 0
      %1491 = vmatpush1.bf16.msra.mxu0 0
      %1492 = vmatprep.subr.bf16.mxu0 0
      %1493 = vmatpush1.bf16.msra.mxu0 0
      %1494 = vmatprep.subr.bf16.mxu0 0
      %1495 = vmatpush1.bf16.msra.mxu0 0
      %1496 = vmatprep.subr.bf16.mxu0 0
      %1497 = vmatpush1.bf16.msra.mxu0 0
      %1498 = vmatprep.subr.bf16.mxu0 0
      %1499 = vmatpush1.bf16.msra.mxu0 0
      %1500 = vmatprep.subr.bf16.mxu0 0
      %1501 = vmatpush1.bf16.msra.mxu0 0
      %1502 = vmatprep.subr.bf16.mxu0 0
      %1503 = vmatpush1.bf16.msra.mxu0 0
      %1504 = vmatprep.subr.bf16.mxu0 0
      %1505 = vmatpush1.bf16.msra.mxu0 0
      %1506 = vmatprep.mubr.bf16.mxu0 0
      %1507 = vmatmul.mubr.bf16.gmra.mrb[0].mxu0 %v1472
      %v1508 = vpop.f32.mrb[0].mxu0
      %v1509 = vadd.f32 0.0, %v1508
      %v1510 = vpop.f32.mrb[0].mxu0
      %v1511 = vpop.f32.mrb[0].mxu0
      %v1512 = vpop.f32.mrb[0].mxu0
      %1513 = vdwg.mxu0
      %v1515 = vsel %vm287, %v1036, 0
      %1517 = vmatprep.subr.bf16.mxu0 0
      %1518 = vmatpush1.bf16.msra.mxu0 %v799
      %1519 = vmatprep.subr.bf16.mxu0 0
      %1520 = vmatpush1.bf16.msra.mxu0 0
      %1521 = vmatprep.subr.bf16.mxu0 0
      %1522 = vmatpush1.bf16.msra.mxu0 0
      %1523 = vmatprep.subr.bf16.mxu0 0
      %1524 = vmatpush1.bf16.msra.mxu0 0
      %1525 = vmatprep.subr.bf16.mxu0 0
      %1526 = vmatpush1.bf16.msra.mxu0 0
      %1527 = vmatprep.subr.bf16.mxu0 0
      %1528 = vmatpush1.bf16.msra.mxu0 0
      %1529 = vmatprep.subr.bf16.mxu0 0
      %1530 = vmatpush1.bf16.msra.mxu0 0
      %1531 = vmatprep.subr.bf16.mxu0 0
      %1532 = vmatpush1.bf16.msra.mxu0 0
      %1533 = vmatprep.subr.bf16.mxu0 0
      %1534 = vmatpush1.bf16.msra.mxu0 0
      %1535 = vmatprep.subr.bf16.mxu0 0
      %1536 = vmatpush1.bf16.msra.mxu0 0
      %1537 = vmatprep.subr.bf16.mxu0 0
      %1538 = vmatpush1.bf16.msra.mxu0 0
      %1539 = vmatprep.subr.bf16.mxu0 0
      %1540 = vmatpush1.bf16.msra.mxu0 0
      %1541 = vmatprep.subr.bf16.mxu0 0
      %1542 = vmatpush1.bf16.msra.mxu0 0
      %1543 = vmatprep.subr.bf16.mxu0 0
      %1544 = vmatpush1.bf16.msra.mxu0 0
      %1545 = vmatprep.subr.bf16.mxu0 0
      %1546 = vmatpush1.bf16.msra.mxu0 0
      %1547 = vmatprep.subr.bf16.mxu0 0
      %1548 = vmatpush1.bf16.msra.mxu0 0
      %1549 = vmatprep.mubr.bf16.mxu0 0
      %1550 = vmatmul.mubr.bf16.gmra.mrb[0].mxu0 %v1515
      %v1551 = vpop.f32.mrb[0].mxu0
      %v1552 = vadd.f32 0.0, %v1551
      %v1553 = vpop.f32.mrb[0].mxu0
      %v1554 = vpop.f32.mrb[0].mxu0
      %v1555 = vpop.f32.mrb[0].mxu0
      %1556 = vdwg.mxu0
      %v1558 = vsel %vm287, %v1037, 0
      %1560 = vmatprep.subr.bf16.mxu0 0
      %1561 = vmatpush1.bf16.msra.mxu0 %v845
      %1562 = vmatprep.subr.bf16.mxu0 0
      %1563 = vmatpush1.bf16.msra.mxu0 0
      %1564 = vmatprep.subr.bf16.mxu0 0
      %1565 = vmatpush1.bf16.msra.mxu0 0
      %1566 = vmatprep.subr.bf16.mxu0 0
      %1567 = vmatpush1.bf16.msra.mxu0 0
      %1568 = vmatprep.subr.bf16.mxu0 0
      %1569 = vmatpush1.bf16.msra.mxu0 0
      %1570 = vmatprep.subr.bf16.mxu0 0
      %1571 = vmatpush1.bf16.msra.mxu0 0
      %1572 = vmatprep.subr.bf16.mxu0 0
      %1573 = vmatpush1.bf16.msra.mxu0 0
      %1574 = vmatprep.subr.bf16.mxu0 0
      %1575 = vmatpush1.bf16.msra.mxu0 0
      %1576 = vmatprep.subr.bf16.mxu0 0
      %1577 = vmatpush1.bf16.msra.mxu0 0
      %1578 = vmatprep.subr.bf16.mxu0 0
      %1579 = vmatpush1.bf16.msra.mxu0 0
      %1580 = vmatprep.subr.bf16.mxu0 0
      %1581 = vmatpush1.bf16.msra.mxu0 0
      %1582 = vmatprep.subr.bf16.mxu0 0
      %1583 = vmatpush1.bf16.msra.mxu0 0
      %1584 = vmatprep.subr.bf16.mxu0 0
      %1585 = vmatpush1.bf16.msra.mxu0 0
      %1586 = vmatprep.subr.bf16.mxu0 0
      %1587 = vmatpush1.bf16.msra.mxu0 0
      %1588 = vmatprep.subr.bf16.mxu0 0
      %1589 = vmatpush1.bf16.msra.mxu0 0
      %1590 = vmatprep.subr.bf16.mxu0 0
      %1591 = vmatpush1.bf16.msra.mxu0 0
      %1592 = vmatprep.mubr.bf16.mxu0 0
      %1593 = vmatmul.mubr.bf16.gmra.mrb[0].mxu0 %v1558
      %v1594 = vpop.f32.mrb[0].mxu0
      %v1595 = vadd.f32 0.0, %v1594
      %v1596 = vpop.f32.mrb[0].mxu0
      %v1597 = vpop.f32.mrb[0].mxu0
      %v1598 = vpop.f32.mrb[0].mxu0
      %1599 = vdwg.mxu0
      %v1601 = vsel %vm287, %v1038, 0
      %1603 = vmatprep.subr.bf16.mxu0 0
      %1604 = vmatpush1.bf16.msra.mxu0 %v891
      %1605 = vmatprep.subr.bf16.mxu0 0
      %1606 = vmatpush1.bf16.msra.mxu0 0
      %1607 = vmatprep.subr.bf16.mxu0 0
      %1608 = vmatpush1.bf16.msra.mxu0 0
      %1609 = vmatprep.subr.bf16.mxu0 0
      %1610 = vmatpush1.bf16.msra.mxu0 0
      %1611 = vmatprep.subr.bf16.mxu0 0
      %1612 = vmatpush1.bf16.msra.mxu0 0
      %1613 = vmatprep.subr.bf16.mxu0 0
      %1614 = vmatpush1.bf16.msra.mxu0 0
      %1615 = vmatprep.subr.bf16.mxu0 0
      %1616 = vmatpush1.bf16.msra.mxu0 0
      %1617 = vmatprep.subr.bf16.mxu0 0
      %1618 = vmatpush1.bf16.msra.mxu0 0
      %1619 = vmatprep.subr.bf16.mxu0 0
      %1620 = vmatpush1.bf16.msra.mxu0 0
      %1621 = vmatprep.subr.bf16.mxu0 0
      %1622 = vmatpush1.bf16.msra.mxu0 0
      %1623 = vmatprep.subr.bf16.mxu0 0
      %1624 = vmatpush1.bf16.msra.mxu0 0
      %1625 = vmatprep.subr.bf16.mxu0 0
      %1626 = vmatpush1.bf16.msra.mxu0 0
      %1627 = vmatprep.subr.bf16.mxu0 0
      %1628 = vmatpush1.bf16.msra.mxu0 0
      %1629 = vmatprep.subr.bf16.mxu0 0
      %1630 = vmatpush1.bf16.msra.mxu0 0
      %1631 = vmatprep.subr.bf16.mxu0 0
      %1632 = vmatpush1.bf16.msra.mxu0 0
      %1633 = vmatprep.subr.bf16.mxu0 0
      %1634 = vmatpush1.bf16.msra.mxu0 0
      %1635 = vmatprep.mubr.bf16.mxu0 0
      %1636 = vmatmul.mubr.bf16.gmra.mrb[0].mxu0 %v1601
      %v1637 = vpop.f32.mrb[0].mxu0
      %v1638 = vadd.f32 0.0, %v1637
      %v1639 = vpop.f32.mrb[0].mxu0
      %v1640 = vpop.f32.mrb[0].mxu0
      %v1641 = vpop.f32.mrb[0].mxu0
      %1642 = vdwg.mxu0
      %v1644 = vsel %vm287, %v1039, 0
      %1646 = vmatprep.subr.bf16.mxu0 0
      %1647 = vmatpush1.bf16.msra.mxu0 %v937
      %1648 = vmatprep.subr.bf16.mxu0 0
      %1649 = vmatpush1.bf16.msra.mxu0 0
      %1650 = vmatprep.subr.bf16.mxu0 0
      %1651 = vmatpush1.bf16.msra.mxu0 0
      %1652 = vmatprep.subr.bf16.mxu0 0
      %1653 = vmatpush1.bf16.msra.mxu0 0
      %1654 = vmatprep.subr.bf16.mxu0 0
      %1655 = vmatpush1.bf16.msra.mxu0 0
      %1656 = vmatprep.subr.bf16.mxu0 0
      %1657 = vmatpush1.bf16.msra.mxu0 0
      %1658 = vmatprep.subr.bf16.mxu0 0
      %1659 = vmatpush1.bf16.msra.mxu0 0
      %1660 = vmatprep.subr.bf16.mxu0 0
      %1661 = vmatpush1.bf16.msra.mxu0 0
      %1662 = vmatprep.subr.bf16.mxu0 0
      %1663 = vmatpush1.bf16.msra.mxu0 0
      %1664 = vmatprep.subr.bf16.mxu0 0
      %1665 = vmatpush1.bf16.msra.mxu0 0
      %1666 = vmatprep.subr.bf16.mxu0 0
      %1667 = vmatpush1.bf16.msra.mxu0 0
      %1668 = vmatprep.subr.bf16.mxu0 0
      %1669 = vmatpush1.bf16.msra.mxu0 0
      %1670 = vmatprep.subr.bf16.mxu0 0
      %1671 = vmatpush1.bf16.msra.mxu0 0
      %1672 = vmatprep.subr.bf16.mxu0 0
      %1673 = vmatpush1.bf16.msra.mxu0 0
      %1674 = vmatprep.subr.bf16.mxu0 0
      %1675 = vmatpush1.bf16.msra.mxu0 0
      %1676 = vmatprep.subr.bf16.mxu0 0
      %1677 = vmatpush1.bf16.msra.mxu0 0
      %1678 = vmatprep.mubr.bf16.mxu0 0
      %1679 = vmatmul.mubr.bf16.gmra.mrb[0].mxu0 %v1644
      %v1680 = vpop.f32.mrb[0].mxu0
      %v1681 = vadd.f32 0.0, %v1680
      %v1682 = vpop.f32.mrb[0].mxu0
      %v1683 = vpop.f32.mrb[0].mxu0
      %v1684 = vpop.f32.mrb[0].mxu0
      %1685 = vdwg.mxu0
      %v1687 = vsel %vm287, %v1040, 0
      %1689 = vmatprep.subr.bf16.mxu0 0
      %1690 = vmatpush1.bf16.msra.mxu0 %v983
      %1691 = vmatprep.subr.bf16.mxu0 0
      %1692 = vmatpush1.bf16.msra.mxu0 0
      %1693 = vmatprep.subr.bf16.mxu0 0
      %1694 = vmatpush1.bf16.msra.mxu0 0
      %1695 = vmatprep.subr.bf16.mxu0 0
      %1696 = vmatpush1.bf16.msra.mxu0 0
      %1697 = vmatprep.subr.bf16.mxu0 0
      %1698 = vmatpush1.bf16.msra.mxu0 0
      %1699 = vmatprep.subr.bf16.mxu0 0
      %1700 = vmatpush1.bf16.msra.mxu0 0
      %1701 = vmatprep.subr.bf16.mxu0 0
      %1702 = vmatpush1.bf16.msra.mxu0 0
      %1703 = vmatprep.subr.bf16.mxu0 0
      %1704 = vmatpush1.bf16.msra.mxu0 0
      %1705 = vmatprep.subr.bf16.mxu0 0
      %1706 = vmatpush1.bf16.msra.mxu0 0
      %1707 = vmatprep.subr.bf16.mxu0 0
      %1708 = vmatpush1.bf16.msra.mxu0 0
      %1709 = vmatprep.subr.bf16.mxu0 0
      %1710 = vmatpush1.bf16.msra.mxu0 0
      %1711 = vmatprep.subr.bf16.mxu0 0
      %1712 = vmatpush1.bf16.msra.mxu0 0
      %1713 = vmatprep.subr.bf16.mxu0 0
      %1714 = vmatpush1.bf16.msra.mxu0 0
      %1715 = vmatprep.subr.bf16.mxu0 0
      %1716 = vmatpush1.bf16.msra.mxu0 0
      %1717 = vmatprep.subr.bf16.mxu0 0
      %1718 = vmatpush1.bf16.msra.mxu0 0
      %1719 = vmatprep.subr.bf16.mxu0 0
      %1720 = vmatpush1.bf16.msra.mxu0 0
      %1721 = vmatprep.mubr.bf16.mxu0 0
      %1722 = vmatmul.mubr.bf16.gmra.mrb[0].mxu0 %v1687
      %v1723 = vpop.f32.mrb[0].mxu0
      %v1724 = vadd.f32 0.0, %v1723
      %v1725 = vpop.f32.mrb[0].mxu0
      %v1726 = vpop.f32.mrb[0].mxu0
      %v1727 = vpop.f32.mrb[0].mxu0
      %1728 = vdwg.mxu0
      %1745 = vrot.lane.b32.xlu0 %v1079, 124
      %v1746 = vpop.permute.xlu0 %1745
      %1747 = vrot.lane.b32.xlu0 %v1122, 124
      %v1748 = vpop.permute.xlu0 %1747
      %1749 = vrot.lane.b32.xlu0 %v1165, 124
      %v1750 = vpop.permute.xlu0 %1749
      %1751 = vrot.lane.b32.xlu0 %v1208, 124
      %v1752 = vpop.permute.xlu0 %1751
      %1753 = vrot.lane.b32.xlu0 %v1251, 124
      %v1754 = vpop.permute.xlu0 %1753
      %1755 = vrot.lane.b32.xlu0 %v1294, 124
      %v1756 = vpop.permute.xlu0 %1755
      %1757 = vrot.lane.b32.xlu0 %v1337, 124
      %v1758 = vpop.permute.xlu0 %1757
      %1759 = vrot.lane.b32.xlu0 %v1380, 124
      %v1760 = vpop.permute.xlu0 %1759
      %1761 = vrot.lane.b32.xlu0 %v1423, 124
      %v1762 = vpop.permute.xlu0 %1761
      %1763 = vrot.lane.b32.xlu0 %v1466, 124
      %v1764 = vpop.permute.xlu0 %1763
      %1765 = vrot.lane.b32.xlu0 %v1509, 124
      %v1766 = vpop.permute.xlu0 %1765
      %1767 = vrot.lane.b32.xlu0 %v1552, 124
      %v1768 = vpop.permute.xlu0 %1767
      %1769 = vrot.lane.b32.xlu0 %v1595, 124
      %v1770 = vpop.permute.xlu0 %1769
      %1771 = vrot.lane.b32.xlu0 %v1638, 124
      %v1772 = vpop.permute.xlu0 %1771
      %1773 = vrot.lane.b32.xlu0 %v1681, 124
      %v1774 = vpop.permute.xlu0 %1773
      %1775 = vrot.lane.b32.xlu0 %v1724, 124
      %v1776 = vpop.permute.xlu0 %1775
      %v1793 = vsub.f32 %v330, %v1746
      %v1794 = vsub.f32 %v376, %v1748
      %v1795 = vsub.f32 %v422, %v1750
      %v1796 = vsub.f32 %v468, %v1752
      %v1797 = vsub.f32 %v514, %v1754
      %v1798 = vsub.f32 %v560, %v1756
      %v1799 = vsub.f32 %v606, %v1758
      %v1800 = vsub.f32 %v652, %v1760
      %v1801 = vsub.f32 %v698, %v1762
      %v1802 = vsub.f32 %v744, %v1764
      %v1803 = vsub.f32 %v790, %v1766
      %v1804 = vsub.f32 %v836, %v1768
      %v1805 = vsub.f32 %v882, %v1770
      %v1806 = vsub.f32 %v928, %v1772
      %v1807 = vsub.f32 %v974, %v1774
      %v1808 = vsub.f32 %v1020, %v1776
      %1809 = vrot.lane.b32.xlu0 %v1079, 4
      %v1810 = vpop.permute.xlu0 %1809
      %1811 = vrot.lane.b32.xlu0 %v1122, 4
      %v1812 = vpop.permute.xlu0 %1811
      %1813 = vrot.lane.b32.xlu0 %v1165, 4
      %v1814 = vpop.permute.xlu0 %1813
      %1815 = vrot.lane.b32.xlu0 %v1208, 4
      %v1816 = vpop.permute.xlu0 %1815
      %1817 = vrot.lane.b32.xlu0 %v1251, 4
      %v1818 = vpop.permute.xlu0 %1817
      %1819 = vrot.lane.b32.xlu0 %v1294, 4
      %v1820 = vpop.permute.xlu0 %1819
      %1821 = vrot.lane.b32.xlu0 %v1337, 4
      %v1822 = vpop.permute.xlu0 %1821
      %1823 = vrot.lane.b32.xlu0 %v1380, 4
      %v1824 = vpop.permute.xlu0 %1823
      %1825 = vrot.lane.b32.xlu0 %v1423, 4
      %v1826 = vpop.permute.xlu0 %1825
      %1827 = vrot.lane.b32.xlu0 %v1466, 4
      %v1828 = vpop.permute.xlu0 %1827
      %1829 = vrot.lane.b32.xlu0 %v1509, 4
      %v1830 = vpop.permute.xlu0 %1829
      %1831 = vrot.lane.b32.xlu0 %v1552, 4
      %v1832 = vpop.permute.xlu0 %1831
      %1833 = vrot.lane.b32.xlu0 %v1595, 4
      %v1834 = vpop.permute.xlu0 %1833
      %1835 = vrot.lane.b32.xlu0 %v1638, 4
      %v1836 = vpop.permute.xlu0 %1835
      %1837 = vrot.lane.b32.xlu0 %v1681, 4
      %v1838 = vpop.permute.xlu0 %1837
      %1839 = vrot.lane.b32.xlu0 %v1724, 4
      %v1840 = vpop.permute.xlu0 %1839
      %v1857 = vadd.f32 %v330, %v1810
      %v1858 = vadd.f32 %v376, %v1812
      %v1859 = vadd.f32 %v422, %v1814
      %v1860 = vadd.f32 %v468, %v1816
      %v1861 = vadd.f32 %v514, %v1818
      %v1862 = vadd.f32 %v560, %v1820
      %v1863 = vadd.f32 %v606, %v1822
      %v1864 = vadd.f32 %v652, %v1824
      %v1865 = vadd.f32 %v698, %v1826
      %v1866 = vadd.f32 %v744, %v1828
      %v1867 = vadd.f32 %v790, %v1830
      %v1868 = vadd.f32 %v836, %v1832
      %v1869 = vadd.f32 %v882, %v1834
      %v1870 = vadd.f32 %v928, %v1836
      %v1871 = vadd.f32 %v974, %v1838
      %v1872 = vadd.f32 %v1020, %v1840
      %v1873 = vsel %vm287, %v1793, %v1857
      %v1874 = vsel %vm287, %v1794, %v1858
      %v1875 = vsel %vm287, %v1795, %v1859
      %v1876 = vsel %vm287, %v1796, %v1860
      %v1877 = vsel %vm287, %v1797, %v1861
      %v1878 = vsel %vm287, %v1798, %v1862
      %v1879 = vsel %vm287, %v1799, %v1863
      %v1880 = vsel %vm287, %v1800, %v1864
      %v1881 = vsel %vm287, %v1801, %v1865
      %v1882 = vsel %vm287, %v1802, %v1866
      %v1883 = vsel %vm287, %v1803, %v1867
      %v1884 = vsel %vm287, %v1804, %v1868
      %v1885 = vsel %vm287, %v1805, %v1869
      %v1886 = vsel %vm287, %v1806, %v1870
      %v1887 = vsel %vm287, %v1807, %v1871
      %v1888 = vsel %vm287, %v1808, %v1872
      %vm1889 = vcmask 58368
      %1890 = vst.msk [vmem:[%s252] sm:$0x3] %vm1889, %v1873
      %1891 = vst.msk [vmem:[%s252 + $0x2] sm:$0x3] %vm1889, %v1874
      %1892 = vst.msk [vmem:[%s252 + $0x4] sm:$0x3] %vm1889, %v1875
      %1893 = vst.msk [vmem:[%s252 + $0x6] sm:$0x3] %vm1889, %v1876
      %1894 = vst.msk [vmem:[%s252 + $0x8] sm:$0x3] %vm1889, %v1877
      %1895 = vst.msk [vmem:[%s252 + $0xa] sm:$0x3] %vm1889, %v1878
      %1896 = vst.msk [vmem:[%s252 + $0xc] sm:$0x3] %vm1889, %v1879
      %1897 = vst.msk [vmem:[%s252 + $0xe] sm:$0x3] %vm1889, %v1880
      %1898 = vst.msk [vmem:[%s252 + $0x10] sm:$0x3] %vm1889, %v1881
      %1899 = vst.msk [vmem:[%s252 + $0x12] sm:$0x3] %vm1889, %v1882
      %1900 = vst.msk [vmem:[%s252 + $0x14] sm:$0x3] %vm1889, %v1883
      %1901 = vst.msk [vmem:[%s252 + $0x16] sm:$0x3] %vm1889, %v1884
      %1902 = vst.msk [vmem:[%s252 + $0x18] sm:$0x3] %vm1889, %v1885
      %1903 = vst.msk [vmem:[%s252 + $0x1a] sm:$0x3] %vm1889, %v1886
      %1904 = vst.msk [vmem:[%s252 + $0x1c] sm:$0x3] %vm1889, %v1887
      %1905 = vst.msk [vmem:[%s252 + $0x1e] sm:$0x3] %vm1889, %v1888
      %s1906 = smul.u32 16, %s18
      %p1907 = scmp.lt.s32.totalorder %s1906, 31
      %s1908 = scalar_select %p1907, %s1906, 31
      %p1909 = scmp.lt.s32.totalorder %s19, 0
      %s1910 = scalar_select %p1909, %s19, 0
      %s1911 = sadd.s32 %s1910, %s1908
      %s1912 = smul.addr %s1911, 2
      %s1913 = scalar_lea.vmem %s3, %s1912
      // Predicated region
      $region33: #{tpu_custom_call.1} parent=31 // pred_check
        %p1914 = pneg %p128
      $region34: #{tpu_custom_call.1} parent=31 // pred_check_branch
        %1916 = sbr.rel (%p1914) target = $region36
      $region35: #{tpu_custom_call.1} parent=31 // pred_region
        %s1917 = smul.u32 16, %s18
      $region36: #{tpu_custom_call.1} parent=31 // pred_fallthru
        _
    $region32: #{tpu_custom_call.1} parent=5 // pred_fallthru
      _
    %p1918 = scmp.le.s32.totalorder 2, %s9
    // Predicated region
    $region37: #{tpu_custom_call.1} parent=5 // pred_check
      %p1919 = pneg %p1918
    $region38: #{tpu_custom_call.1} parent=5 // pred_check_branch
      %1921 = sbr.rel (%p1919) target = $region40
    $region39: #{tpu_custom_call.1} parent=5 // pred_region
      %s1922 = ssub.s32 %s9, 2
      // Predicated region
      $region41: #{tpu_custom_call.1} parent=39 // pred_check
        %p1923 = pneg %p134
      $region42: #{tpu_custom_call.1} parent=39 // pred_check_branch
        %1925 = sbr.rel (%p1923) target = $region44
      $region43: #{tpu_custom_call.1} parent=39 // pred_region
        %s1926 = smul.u32 16, %s20
        %p1927 = scmp.lt.s32.totalorder %s1926, 31
        %s1928 = scalar_select %p1927, %s1926, 31
        %p1929 = scmp.lt.s32.totalorder %s21, 0
        %s1930 = scalar_select %p1929, %s21, 0
        %s1931 = sadd.s32 %s1930, %s1928
        %s1932 = smul.addr %s1931, 2
        %s1933 = scalar_lea.vmem %s3, %s1932
      $region44: #{tpu_custom_call.1} parent=39 // pred_fallthru
        _
    $region40: #{tpu_custom_call.1} parent=5 // pred_fallthru
      _
  $region6: #{tpu_custom_call.1} parent=0 // loop_footer
    %s13 = sadd.s32 1, %s9
  $region7: #{tpu_custom_call.1} parent=0 // loop_footer_branch
    %8 = sbr.rel target = $region3
  $region8: #{tpu_custom_call.1} parent=0 // loop_exit
    _

</llo_original>
